<compile_context>
chip_gen: v7x
topology: tpu7x:2x2x1
jax: 0.10.0
libtpu: 0.0.40
codegen_flags: <defaults>
</compile_context>

<pallas_src>
import functools

import jax
import jax.numpy as jnp
from jax import lax
from jax.experimental import pallas as pl
from jax.experimental.pallas import tpu as pltpu

LEAKY_SLOPE = 0.01   # nn.LeakyReLU() default
BN_EPS = 1e-5        # nn.BatchNorm2d default


def _leaky(x):
    return jnp.where(x >= 0, x, LEAKY_SLOPE * x)


# ----------------------------- kernel ----------------------------------------
def res_context_kernel(x_ref, w1_ref, b1_ref, w2_ref, b2_ref, w3_ref, b3_ref,
                       g1_ref, be1_ref, g2_ref, be2_ref, o_ref, pad_ref, *, cout):
    N, Hp4, WC = pad_ref.shape
    H = Hp4 - 4
    NH = N * H

    def batch_norm(x, gamma_t, beta_t):
        # x: (NH, W*C) lane-dense. Per-channel batch stats over N*H*W, folded
        # into one per-lane scale/shift (channel pattern already tiled across W).
        count = NH * (WC // cout)
        sx = jnp.sum(x, axis=0, keepdims=True)         # (1, W*C) per-(w,c) sums
        sxx = jnp.sum(x * x, axis=0, keepdims=True)
        # Tree reduce + broadcast over the W groups via lane rolls (exact f32,
        # XLU slot; requires W to be a power of two — asserted in the wrapper).
        step = cout
        while step < WC:
            sx = sx + pltpu.roll(sx, shift=step, axis=1)
            sxx = sxx + pltpu.roll(sxx, shift=step, axis=1)
            step *= 2
        inv = 1.0 / count
        mean = sx * inv
        var = jnp.maximum(sxx * inv - mean * mean, 0.0)
        scale = gamma_t * lax.rsqrt(var + BN_EPS)       # rsqrt -> EUP slot
        shift = beta_t - mean * scale
        return x * scale + shift

    # ---- conv1: 1x1 conv as ONE block-diagonal matmul -> lane-dense output ----
    shortcut = jnp.dot(x_ref[...], w1_ref[...], preferred_element_type=jnp.float32)
    shortcut = _leaky(shortcut + b1_ref[...])           # (NH, W*C)

    # Zero ONLY the 2-row top/bottom halo ring (once); the interior is fully
    # overwritten before each conv, so the halo stays valid for both convs.
    pad_ref[:, 0:2, :] = jnp.zeros((N, 2, WC), jnp.float32)
    pad_ref[:, H + 2:H + 4, :] = jnp.zeros((N, 2, WC), jnp.float32)

    def conv3x3(inp, bands_ref, b_ref, dil):
        # One lane-dense (NH, W*C) @ (W*C, W*C) matmul per kernel row ky; the
        # kx/dilation shift is baked into the banded weight, zero padding in W
        # is realised by simply omitting out-of-range taps from the band.
        pad_ref[:, 2:2 + H, :] = inp.reshape(N, H, WC)
        taps = []
        for ky in range(3):
            oy = 2 + dil * (ky - 1)
            lhs = pad_ref[:, oy:oy + H, :].reshape(NH, WC).astype(jnp.bfloat16)
            taps.append(jnp.dot(lhs, bands_ref[ky],
                                preferred_element_type=jnp.float32))
        return _leaky(taps[0] + taps[1] + taps[2] + b_ref[...])

    # ---- conv2 (3x3, pad=1) + bn1, conv3 (3x3, dil=2, pad=2) + bn2 -------------
    resA = conv3x3(shortcut, w2_ref, b2_ref, 1)
    resA1 = batch_norm(resA, g1_ref[...], be1_ref[...])
    resA = conv3x3(resA1, w3_ref, b3_ref, 2)
    resA2 = batch_norm(resA, g2_ref[...], be2_ref[...])

    # ---- residual add + lane-dense (unmasked 128-lane) store -------------------
    o_ref[...] = shortcut + resA2


# -------------------------- wrapper-side weight plumbing -----------------------
def _blockdiag_1x1(w1, W):
    """(Cin, Cout) -> block-diagonal (W*Cin, W*Cout) bf16 so the 1x1 conv is one
    matmul producing the lane-dense (N*H, W*Cout) layout directly."""
    Cin, Cout = w1.shape
    i_w = jnp.arange(W * Cin) // Cin
    i_c = jnp.arange(W * Cin) % Cin
    o_w = jnp.arange(W * Cout) // Cout
    o_c = jnp.arange(W * Cout) % Cout
    mask = i_w[:, None] == o_w[None, :]
    block = w1[i_c[:, None], o_c[None, :]]
    return jnp.where(mask, block, 0.0).astype(jnp.bfloat16)


def _banded_3x3(w_hwio, W, dil):
    """(3,3,C,C) HWIO -> (3, W*C, W*C) bf16 per-ky banded weights. Band entry
    (wi*C+ci, wo*C+co) = w[ky,kx,ci,co] where wi = wo + dil*(kx-1); out-of-range
    wi taps are omitted, which is exactly zero padding in W."""
    C = w_hwio.shape[-1]
    k_w = jnp.arange(W * C) // C
    k_c = jnp.arange(W * C) % C
    blocks = w_hwio[:, :, k_c[:, None], k_c[None, :]]      # (3, 3, WC, WC)
    bands = []
    for ky in range(3):
        b = jnp.zeros((W * C, W * C), jnp.float32)
        for kx in range(3):
            mask = k_w[:, None] == (k_w[None, :] + dil * (kx - 1))
            b = b + jnp.where(mask, blocks[ky, kx], 0.0)
        bands.append(b)
    return jnp.stack(bands, axis=0).astype(jnp.bfloat16)


def res_context_block(x_nhwc, params):
    N, H, W, Cin = x_nhwc.shape
    Cout = params["w1"].shape[-1]
    WC = W * Cout
    # TODO(synk): lift this restriction (and add row tiling / two-pass BN) for
    # general production shapes; the in-kernel BN lane-roll reduce needs W = 2^k.
    assert W > 0 and (W & (W - 1)) == 0, "W must be a power of two"

    x2d = x_nhwc.reshape(N * H, W * Cin).astype(jnp.bfloat16)   # free reshape
    wbd1 = _blockdiag_1x1(params["w1"], W)
    bands2 = _banded_3x3(params["w2"], W, 1)
    bands3 = _banded_3x3(params["w3"], W, 2)

    def tile_c(v):   # per-channel (1, C) vector -> lane-dense (1, W*C)
        return jnp.tile(v.reshape(1, Cout).astype(jnp.float32), (1, W))

    args = (x2d, wbd1, tile_c(params["b1"]),
            bands2, tile_c(params["b2"]),
            bands3, tile_c(params["b3"]),
            tile_c(params["g1"]), tile_c(params["be1"]),
            tile_c(params["g2"]), tile_c(params["be2"]))

    def full(shape):
        return pl.BlockSpec(shape, lambda i, _n=len(shape): (0,) * _n)

    out = pl.pallas_call(
        functools.partial(res_context_kernel, cout=Cout),
        out_shape=jax.ShapeDtypeStruct((N * H, WC), jnp.float32),
        grid_spec=pltpu.PrefetchScalarGridSpec(
            num_scalar_prefetch=0,
            grid=(1,),
            in_specs=[full(a.shape) for a in args],
            out_specs=full((N * H, WC)),
            scratch_shapes=[
                # lane-dense row-halo scratch shared by both 3x3 convs
                pltpu.VMEM((N, H + 4, WC), jnp.float32),
            ],
        ),
        compiler_params=pltpu.CompilerParams(
            dimension_semantics=("arbitrary",),
            vmem_limit_bytes=32 * 1024 * 1024,
        ),
    )(*args)
    # (N*H, W*C) and (N, H, W, C) share the same row-major layout.
    return out.reshape(N, H, W, Cout)


# ---------------------------- pure-JAX references -----------------------------
def _conv_ref(x, w_hwio, b, dilation=1, padding=0, cast_bf16=False):
    lhs, rhs = x, w_hwio
    if cast_bf16:
        lhs = lhs.astype(jnp.bfloat16)
        rhs = rhs.astype(jnp.bfloat16)
    y = lax.conv_general_dilated(
        lhs, rhs, window_strides=(1, 1),
        padding=((padding, padding), (padding, padding)),
        rhs_dilation=(dilation, dilation),
        dimension_numbers=("NHWC", "HWIO", "NHWC"),
        preferred_element_type=jnp.float32)
    return y + b.reshape(1, 1, 1, -1)


def _bn_ref(x, g, b):
    mean = x.mean(axis=(0, 1, 2), keepdims=True)
    var = ((x - mean) ** 2).mean(axis=(0, 1, 2), keepdims=True)
    return (x - mean) * lax.rsqrt(var + BN_EPS) * g.reshape(1, 1, 1, -1) \
        + b.reshape(1, 1, 1, -1)


def reference(x_nhwc, p, cast_bf16=False):
    Cin = x_nhwc.shape[-1]
    Cout = p["w1"].shape[-1]
    sc = _leaky(_conv_ref(x_nhwc, p["w1"].reshape(1, 1, Cin, Cout), p["b1"],
                          cast_bf16=cast_bf16))
    r = _leaky(_conv_ref(sc, p["w2"], p["b2"], padding=1, cast_bf16=cast_bf16))
    r1 = _bn_ref(r, p["g1"], p["be1"])
    r = _leaky(_conv_ref(r1, p["w3"], p["b3"], dilation=2, padding=2,
                         cast_bf16=cast_bf16))
    r2 = _bn_ref(r, p["g2"], p["be2"])
    return sc + r2


if __name__ == "__main__":
    N, Cin, Cout, H, W = 2, 4, 8, 16, 16

    key = jax.random.PRNGKey(0)
    ks = jax.random.split(key, 11)

    x_nchw = jax.random.normal(ks[0], (N, Cin, H, W), jnp.float32)
    x_nhwc = jnp.transpose(x_nchw, (0, 2, 3, 1))  # NCHW -> NHWC for the kernel

    params = {
        "w1": 0.3 * jax.random.normal(ks[1], (Cin, Cout), jnp.float32),
        "b1": 0.1 * jax.random.normal(ks[2], (1, Cout), jnp.float32),
        "w2": 0.2 * jax.random.normal(ks[3], (3, 3, Cout, Cout), jnp.float32),
        "b2": 0.1 * jax.random.normal(ks[4], (1, Cout), jnp.float32),
        "w3": 0.2 * jax.random.normal(ks[5], (3, 3, Cout, Cout), jnp.float32),
        "b3": 0.1 * jax.random.normal(ks[6], (1, Cout), jnp.float32),
        "g1": 1.0 + 0.1 * jax.random.normal(ks[7], (1, Cout), jnp.float32),
        "be1": 0.1 * jax.random.normal(ks[8], (1, Cout), jnp.float32),
        "g2": 1.0 + 0.1 * jax.random.normal(ks[9], (1, Cout), jnp.float32),
        "be2": 0.1 * jax.random.normal(ks[10], (1, Cout), jnp.float32),
    }

    out = jax.block_until_ready(res_context_block(x_nhwc, params))

    # Reference with the same conv precision (bf16 operands, f32 accumulation):
    ref_bf16 = reference(x_nhwc, params, cast_bf16=True)
    # Module-faithful full-f32 reference (loose check: bf16 MXU operands):
    ref_f32 = reference(x_nhwc, params, cast_bf16=False)

    err_bf16 = float(jnp.max(jnp.abs(out - ref_bf16)))
    err_f32 = float(jnp.max(jnp.abs(out - ref_f32)))

    assert out.shape == (N, H, W, Cout), out.shape
    assert bool(jnp.isfinite(out).all())
    assert err_bf16 < 5e-3, f"bf16-conv reference max abs err = {err_bf16}"
    assert err_f32 < 0.25, f"f32 reference max abs err = {err_f32}"
    print("KERNEL_OK")
</pallas_src>

<mosaic_0001>
module attributes {stable_mosaic.version = 11 : i64} {
  func.func @res_context_kernel(%arg0: i32, %arg1: memref<32x64xbf16, #tpu.memory_space<vmem>>, %arg2: memref<64x128xbf16, #tpu.memory_space<vmem>>, %arg3: memref<1x128xf32, #tpu.memory_space<vmem>>, %arg4: memref<3x128x128xbf16, #tpu.memory_space<vmem>>, %arg5: memref<1x128xf32, #tpu.memory_space<vmem>>, %arg6: memref<3x128x128xbf16, #tpu.memory_space<vmem>>, %arg7: memref<1x128xf32, #tpu.memory_space<vmem>>, %arg8: memref<1x128xf32, #tpu.memory_space<vmem>>, %arg9: memref<1x128xf32, #tpu.memory_space<vmem>>, %arg10: memref<1x128xf32, #tpu.memory_space<vmem>>, %arg11: memref<1x128xf32, #tpu.memory_space<vmem>>, %arg12: memref<32x128xf32, #tpu.memory_space<vmem>>, %arg13: memref<2x20x128xf32, #tpu.memory_space<vmem>>) attributes {dimension_semantics = [#tpu.dimension_semantics<arbitrary>], iteration_bounds = array<i64: 1>, scalar_prefetch = 0 : i64, scratch_operands = 1 : i64, tpu.core_type = #tpu.core_type<tc>, window_params = [{pipeline_mode = #tpu.pipeline_mode<synchronous>, transform_indices = @transform_0, window_bounds = array<i64: 32, 64>}, {pipeline_mode = #tpu.pipeline_mode<synchronous>, transform_indices = @transform_1, window_bounds = array<i64: 64, 128>}, {pipeline_mode = #tpu.pipeline_mode<synchronous>, transform_indices = @transform_2, window_bounds = array<i64: 1, 128>}, {pipeline_mode = #tpu.pipeline_mode<synchronous>, transform_indices = @transform_3, window_bounds = array<i64: 3, 128, 128>}, {pipeline_mode = #tpu.pipeline_mode<synchronous>, transform_indices = @transform_4, window_bounds = array<i64: 1, 128>}, {pipeline_mode = #tpu.pipeline_mode<synchronous>, transform_indices = @transform_5, window_bounds = array<i64: 3, 128, 128>}, {pipeline_mode = #tpu.pipeline_mode<synchronous>, transform_indices = @transform_6, window_bounds = array<i64: 1, 128>}, {pipeline_mode = #tpu.pipeline_mode<synchronous>, transform_indices = @transform_7, window_bounds = array<i64: 1, 128>}, {pipeline_mode = #tpu.pipeline_mode<synchronous>, transform_indices = @transform_8, window_bounds = array<i64: 1, 128>}, {pipeline_mode = #tpu.pipeline_mode<synchronous>, transform_indices = @transform_9, window_bounds = array<i64: 1, 128>}, {pipeline_mode = #tpu.pipeline_mode<synchronous>, transform_indices = @transform_10, window_bounds = array<i64: 1, 128>}, {pipeline_mode = #tpu.pipeline_mode<synchronous>, transform_indices = @transform_11, window_bounds = array<i64: 32, 128>}]} {
    %c0 = arith.constant 0 : index
    %c0_0 = arith.constant 0 : index
    %0 = vector.load %arg1[%c0, %c0_0] : memref<32x64xbf16, #tpu.memory_space<vmem>>, vector<32x64xbf16>
    %c0_1 = arith.constant 0 : index
    %c0_2 = arith.constant 0 : index
    %1 = vector.load %arg2[%c0_1, %c0_2] : memref<64x128xbf16, #tpu.memory_space<vmem>>, vector<64x128xbf16>
    %cst = arith.constant dense<0.000000e+00> : vector<32x128xf32>
    %2 = tpu.matmul %0, %1, %cst {dimension_numbers = #tpu.dot_dimension_numbers<[1], [0], [0], [1], [0, 0, 1, 1], [], []>} : vector<32x64xbf16>, vector<64x128xbf16>, vector<32x128xf32> -> vector<32x128xf32>
    %c0_3 = arith.constant 0 : index
    %c0_4 = arith.constant 0 : index
    %3 = vector.load %arg3[%c0_3, %c0_4] : memref<1x128xf32, #tpu.memory_space<vmem>>, vector<1x128xf32>
    %4 = vector.broadcast %3 : vector<1x128xf32> to vector<32x128xf32>
    %5 = arith.addf %2, %4 : vector<32x128xf32>
    %cst_5 = arith.constant 0.000000e+00 : f32
    %6 = vector.broadcast %cst_5 : f32 to vector<32x128xf32>
    %7 = arith.cmpf oge, %5, %6 : vector<32x128xf32>
    %cst_6 = arith.constant 0.00999999977 : f32
    %8 = vector.broadcast %cst_6 : f32 to vector<32x128xf32>
    %9 = arith.mulf %8, %5 : vector<32x128xf32>
    %10 = arith.select %7, %5, %9 : vector<32x128xi1>, vector<32x128xf32>
    %cst_7 = arith.constant 0.000000e+00 : f32
    %11 = vector.broadcast %cst_7 : f32 to vector<2x2x128xf32>
    %c0_8 = arith.constant 0 : index
    %c0_9 = arith.constant 0 : index
    %c0_10 = arith.constant 0 : index
    %12 = vector.load %arg13[%c0_8, %c0_9, %c0_10] : memref<2x20x128xf32, #tpu.memory_space<vmem>>, vector<2x2x128xf32>
    tpu.vector_store %arg13[%c0_8, %c0_9, %c0_10], %11 {strides = array<i32>} : memref<2x20x128xf32, #tpu.memory_space<vmem>>, vector<2x2x128xf32>,
    %cst_11 = arith.constant 0.000000e+00 : f32
    %13 = vector.broadcast %cst_11 : f32 to vector<2x2x128xf32>
    %c0_12 = arith.constant 0 : index
    %c18 = arith.constant 18 : index
    %c0_13 = arith.constant 0 : index
    %14 = vector.load %arg13[%c0_12, %c18, %c0_13] : memref<2x20x128xf32, #tpu.memory_space<vmem>>, vector<2x2x128xf32>
    tpu.vector_store %arg13[%c0_12, %c18, %c0_13], %13 {strides = array<i32>} : memref<2x20x128xf32, #tpu.memory_space<vmem>>, vector<2x2x128xf32>,
    %15 = vector.shape_cast %10 : vector<32x128xf32> to vector<2x16x128xf32>
    %c0_14 = arith.constant 0 : index
    %c2 = arith.constant 2 : index
    %c0_15 = arith.constant 0 : index
    %16 = vector.load %arg13[%c0_14, %c2, %c0_15] : memref<2x20x128xf32, #tpu.memory_space<vmem>>, vector<2x16x128xf32>
    tpu.vector_store %arg13[%c0_14, %c2, %c0_15], %15 {strides = array<i32>} : memref<2x20x128xf32, #tpu.memory_space<vmem>>, vector<2x16x128xf32>,
    %c0_16 = arith.constant 0 : index
    %c1 = arith.constant 1 : index
    %c0_17 = arith.constant 0 : index
    %17 = vector.load %arg13[%c0_16, %c1, %c0_17] : memref<2x20x128xf32, #tpu.memory_space<vmem>>, vector<2x16x128xf32>
    %18 = vector.shape_cast %17 : vector<2x16x128xf32> to vector<32x128xf32>
    %19 = arith.truncf %18 : vector<32x128xf32> to vector<32x128xbf16>
    %c0_18 = arith.constant 0 : index
    %c0_19 = arith.constant 0 : index
    %c0_20 = arith.constant 0 : index
    %20 = vector.load %arg4[%c0_18, %c0_19, %c0_20] : memref<3x128x128xbf16, #tpu.memory_space<vmem>>, vector<1x128x128xbf16>
    %21 = vector.shape_cast %20 : vector<1x128x128xbf16> to vector<128x128xbf16>
    %cst_21 = arith.constant dense<0.000000e+00> : vector<32x128xf32>
    %22 = tpu.matmul %19, %21, %cst_21 {dimension_numbers = #tpu.dot_dimension_numbers<[1], [0], [0], [1], [0, 0, 1, 1], [], []>} : vector<32x128xbf16>, vector<128x128xbf16>, vector<32x128xf32> -> vector<32x128xf32>
    %c0_22 = arith.constant 0 : index
    %c2_23 = arith.constant 2 : index
    %c0_24 = arith.constant 0 : index
    %23 = vector.load %arg13[%c0_22, %c2_23, %c0_24] : memref<2x20x128xf32, #tpu.memory_space<vmem>>, vector<2x16x128xf32>
    %24 = vector.shape_cast %23 : vector<2x16x128xf32> to vector<32x128xf32>
    %25 = arith.truncf %24 : vector<32x128xf32> to vector<32x128xbf16>
    %c1_25 = arith.constant 1 : index
    %c0_26 = arith.constant 0 : index
    %c0_27 = arith.constant 0 : index
    %26 = vector.load %arg4[%c1_25, %c0_26, %c0_27] : memref<3x128x128xbf16, #tpu.memory_space<vmem>>, vector<1x128x128xbf16>
    %27 = vector.shape_cast %26 : vector<1x128x128xbf16> to vector<128x128xbf16>
    %cst_28 = arith.constant dense<0.000000e+00> : vector<32x128xf32>
    %28 = tpu.matmul %25, %27, %cst_28 {dimension_numbers = #tpu.dot_dimension_numbers<[1], [0], [0], [1], [0, 0, 1, 1], [], []>} : vector<32x128xbf16>, vector<128x128xbf16>, vector<32x128xf32> -> vector<32x128xf32>
    %c0_29 = arith.constant 0 : index
    %c3 = arith.constant 3 : index
    %c0_30 = arith.constant 0 : index
    %29 = vector.load %arg13[%c0_29, %c3, %c0_30] : memref<2x20x128xf32, #tpu.memory_space<vmem>>, vector<2x16x128xf32>
    %30 = vector.shape_cast %29 : vector<2x16x128xf32> to vector<32x128xf32>
    %31 = arith.truncf %30 : vector<32x128xf32> to vector<32x128xbf16>
    %c2_31 = arith.constant 2 : index
    %c0_32 = arith.constant 0 : index
    %c0_33 = arith.constant 0 : index
    %32 = vector.load %arg4[%c2_31, %c0_32, %c0_33] : memref<3x128x128xbf16, #tpu.memory_space<vmem>>, vector<1x128x128xbf16>
    %33 = vector.shape_cast %32 : vector<1x128x128xbf16> to vector<128x128xbf16>
    %cst_34 = arith.constant dense<0.000000e+00> : vector<32x128xf32>
    %34 = tpu.matmul %31, %33, %cst_34 {dimension_numbers = #tpu.dot_dimension_numbers<[1], [0], [0], [1], [0, 0, 1, 1], [], []>} : vector<32x128xbf16>, vector<128x128xbf16>, vector<32x128xf32> -> vector<32x128xf32>
    %35 = arith.addf %22, %28 : vector<32x128xf32>
    %36 = arith.addf %35, %34 : vector<32x128xf32>
    %c0_35 = arith.constant 0 : index
    %c0_36 = arith.constant 0 : index
    %37 = vector.load %arg5[%c0_35, %c0_36] : memref<1x128xf32, #tpu.memory_space<vmem>>, vector<1x128xf32>
    %38 = vector.broadcast %37 : vector<1x128xf32> to vector<32x128xf32>
    %39 = arith.addf %36, %38 : vector<32x128xf32>
    %cst_37 = arith.constant 0.000000e+00 : f32
    %40 = vector.broadcast %cst_37 : f32 to vector<32x128xf32>
    %41 = arith.cmpf oge, %39, %40 : vector<32x128xf32>
    %cst_38 = arith.constant 0.00999999977 : f32
    %42 = vector.broadcast %cst_38 : f32 to vector<32x128xf32>
    %43 = arith.mulf %42, %39 : vector<32x128xf32>
    %44 = arith.select %41, %39, %43 : vector<32x128xi1>, vector<32x128xf32>
    %c0_39 = arith.constant 0 : index
    %c0_40 = arith.constant 0 : index
    %45 = vector.load %arg8[%c0_39, %c0_40] : memref<1x128xf32, #tpu.memory_space<vmem>>, vector<1x128xf32>
    %c0_41 = arith.constant 0 : index
    %c0_42 = arith.constant 0 : index
    %46 = vector.load %arg9[%c0_41, %c0_42] : memref<1x128xf32, #tpu.memory_space<vmem>>, vector<1x128xf32>
    %cst_43 = arith.constant dense<0.000000e+00> : vector<128xf32>
    %47 = vector.multi_reduction <add>, %44, %cst_43 [0] : vector<32x128xf32> to vector<128xf32>
    %48 = vector.shape_cast %47 : vector<128xf32> to vector<1x128xf32>
    %49 = arith.mulf %44, %44 : vector<32x128xf32>
    %cst_44 = arith.constant dense<0.000000e+00> : vector<128xf32>
    %50 = vector.multi_reduction <add>, %49, %cst_44 [0] : vector<32x128xf32> to vector<128xf32>
    %51 = vector.shape_cast %50 : vector<128xf32> to vector<1x128xf32>
    %c8_i32 = arith.constant 8 : i32
    %52 = tpu.dynamic_rotate %48 by %c8_i32 dim 1 : vector<1x128xf32>, i32 -> vector<1x128xf32>
    %53 = arith.addf %48, %52 : vector<1x128xf32>
    %c8_i32_45 = arith.constant 8 : i32
    %54 = tpu.dynamic_rotate %51 by %c8_i32_45 dim 1 : vector<1x128xf32>, i32 -> vector<1x128xf32>
    %55 = arith.addf %51, %54 : vector<1x128xf32>
    %c16_i32 = arith.constant 16 : i32
    %56 = tpu.dynamic_rotate %53 by %c16_i32 dim 1 : vector<1x128xf32>, i32 -> vector<1x128xf32>
    %57 = arith.addf %53, %56 : vector<1x128xf32>
    %c16_i32_46 = arith.constant 16 : i32
    %58 = tpu.dynamic_rotate %55 by %c16_i32_46 dim 1 : vector<1x128xf32>, i32 -> vector<1x128xf32>
    %59 = arith.addf %55, %58 : vector<1x128xf32>
    %c32_i32 = arith.constant 32 : i32
    %60 = tpu.dynamic_rotate %57 by %c32_i32 dim 1 : vector<1x128xf32>, i32 -> vector<1x128xf32>
    %61 = arith.addf %57, %60 : vector<1x128xf32>
    %c32_i32_47 = arith.constant 32 : i32
    %62 = tpu.dynamic_rotate %59 by %c32_i32_47 dim 1 : vector<1x128xf32>, i32 -> vector<1x128xf32>
    %63 = arith.addf %59, %62 : vector<1x128xf32>
    %c64_i32 = arith.constant 64 : i32
    %64 = tpu.dynamic_rotate %61 by %c64_i32 dim 1 : vector<1x128xf32>, i32 -> vector<1x128xf32>
    %65 = arith.addf %61, %64 : vector<1x128xf32>
    %c64_i32_48 = arith.constant 64 : i32
    %66 = tpu.dynamic_rotate %63 by %c64_i32_48 dim 1 : vector<1x128xf32>, i32 -> vector<1x128xf32>
    %67 = arith.addf %63, %66 : vector<1x128xf32>
    %cst_49 = arith.constant 0.001953125 : f32
    %68 = vector.broadcast %cst_49 : f32 to vector<1x128xf32>
    %69 = arith.mulf %65, %68 : vector<1x128xf32>
    %cst_50 = arith.constant 0.001953125 : f32
    %70 = vector.broadcast %cst_50 : f32 to vector<1x128xf32>
    %71 = arith.mulf %67, %70 : vector<1x128xf32>
    %72 = arith.mulf %69, %69 : vector<1x128xf32>
    %73 = arith.subf %71, %72 : vector<1x128xf32>
    %cst_51 = arith.constant 0.000000e+00 : f32
    %74 = vector.broadcast %cst_51 : f32 to vector<1x128xf32>
    %75 = arith.maximumf %73, %74 : vector<1x128xf32>
    %cst_52 = arith.constant 9.99999974E-6 : f32
    %76 = vector.broadcast %cst_52 : f32 to vector<1x128xf32>
    %77 = arith.addf %75, %76 : vector<1x128xf32>
    %78 = math.rsqrt %77 : vector<1x128xf32>
    %79 = arith.mulf %45, %78 : vector<1x128xf32>
    %80 = arith.mulf %69, %79 : vector<1x128xf32>
    %81 = arith.subf %46, %80 : vector<1x128xf32>
    %82 = vector.broadcast %79 : vector<1x128xf32> to vector<32x128xf32>
    %83 = arith.mulf %44, %82 : vector<32x128xf32>
    %84 = vector.broadcast %81 : vector<1x128xf32> to vector<32x128xf32>
    %85 = arith.addf %83, %84 : vector<32x128xf32>
    %86 = vector.shape_cast %85 : vector<32x128xf32> to vector<2x16x128xf32>
    %c0_53 = arith.constant 0 : index
    %c2_54 = arith.constant 2 : index
    %c0_55 = arith.constant 0 : index
    %87 = vector.load %arg13[%c0_53, %c2_54, %c0_55] : memref<2x20x128xf32, #tpu.memory_space<vmem>>, vector<2x16x128xf32>
    tpu.vector_store %arg13[%c0_53, %c2_54, %c0_55], %86 {strides = array<i32>} : memref<2x20x128xf32, #tpu.memory_space<vmem>>, vector<2x16x128xf32>,
    %c0_56 = arith.constant 0 : index
    %c0_57 = arith.constant 0 : index
    %c0_58 = arith.constant 0 : index
    %88 = vector.load %arg13[%c0_56, %c0_57, %c0_58] : memref<2x20x128xf32, #tpu.memory_space<vmem>>, vector<2x16x128xf32>
    %89 = vector.shape_cast %88 : vector<2x16x128xf32> to vector<32x128xf32>
    %90 = arith.truncf %89 : vector<32x128xf32> to vector<32x128xbf16>
    %c0_59 = arith.constant 0 : index
    %c0_60 = arith.constant 0 : index
    %c0_61 = arith.constant 0 : index
    %91 = vector.load %arg6[%c0_59, %c0_60, %c0_61] : memref<3x128x128xbf16, #tpu.memory_space<vmem>>, vector<1x128x128xbf16>
    %92 = vector.shape_cast %91 : vector<1x128x128xbf16> to vector<128x128xbf16>
    %cst_62 = arith.constant dense<0.000000e+00> : vector<32x128xf32>
    %93 = tpu.matmul %90, %92, %cst_62 {dimension_numbers = #tpu.dot_dimension_numbers<[1], [0], [0], [1], [0, 0, 1, 1], [], []>} : vector<32x128xbf16>, vector<128x128xbf16>, vector<32x128xf32> -> vector<32x128xf32>
    %c0_63 = arith.constant 0 : index
    %c2_64 = arith.constant 2 : index
    %c0_65 = arith.constant 0 : index
    %94 = vector.load %arg13[%c0_63, %c2_64, %c0_65] : memref<2x20x128xf32, #tpu.memory_space<vmem>>, vector<2x16x128xf32>
    %95 = vector.shape_cast %94 : vector<2x16x128xf32> to vector<32x128xf32>
    %96 = arith.truncf %95 : vector<32x128xf32> to vector<32x128xbf16>
    %c1_66 = arith.constant 1 : index
    %c0_67 = arith.constant 0 : index
    %c0_68 = arith.constant 0 : index
    %97 = vector.load %arg6[%c1_66, %c0_67, %c0_68] : memref<3x128x128xbf16, #tpu.memory_space<vmem>>, vector<1x128x128xbf16>
    %98 = vector.shape_cast %97 : vector<1x128x128xbf16> to vector<128x128xbf16>
    %cst_69 = arith.constant dense<0.000000e+00> : vector<32x128xf32>
    %99 = tpu.matmul %96, %98, %cst_69 {dimension_numbers = #tpu.dot_dimension_numbers<[1], [0], [0], [1], [0, 0, 1, 1], [], []>} : vector<32x128xbf16>, vector<128x128xbf16>, vector<32x128xf32> -> vector<32x128xf32>
    %c0_70 = arith.constant 0 : index
    %c4 = arith.constant 4 : index
    %c0_71 = arith.constant 0 : index
    %100 = vector.load %arg13[%c0_70, %c4, %c0_71] : memref<2x20x128xf32, #tpu.memory_space<vmem>>, vector<2x16x128xf32>
    %101 = vector.shape_cast %100 : vector<2x16x128xf32> to vector<32x128xf32>
    %102 = arith.truncf %101 : vector<32x128xf32> to vector<32x128xbf16>
    %c2_72 = arith.constant 2 : index
    %c0_73 = arith.constant 0 : index
    %c0_74 = arith.constant 0 : index
    %103 = vector.load %arg6[%c2_72, %c0_73, %c0_74] : memref<3x128x128xbf16, #tpu.memory_space<vmem>>, vector<1x128x128xbf16>
    %104 = vector.shape_cast %103 : vector<1x128x128xbf16> to vector<128x128xbf16>
    %cst_75 = arith.constant dense<0.000000e+00> : vector<32x128xf32>
    %105 = tpu.matmul %102, %104, %cst_75 {dimension_numbers = #tpu.dot_dimension_numbers<[1], [0], [0], [1], [0, 0, 1, 1], [], []>} : vector<32x128xbf16>, vector<128x128xbf16>, vector<32x128xf32> -> vector<32x128xf32>
    %106 = arith.addf %93, %99 : vector<32x128xf32>
    %107 = arith.addf %106, %105 : vector<32x128xf32>
    %c0_76 = arith.constant 0 : index
    %c0_77 = arith.constant 0 : index
    %108 = vector.load %arg7[%c0_76, %c0_77] : memref<1x128xf32, #tpu.memory_space<vmem>>, vector<1x128xf32>
    %109 = vector.broadcast %108 : vector<1x128xf32> to vector<32x128xf32>
    %110 = arith.addf %107, %109 : vector<32x128xf32>
    %cst_78 = arith.constant 0.000000e+00 : f32
    %111 = vector.broadcast %cst_78 : f32 to vector<32x128xf32>
    %112 = arith.cmpf oge, %110, %111 : vector<32x128xf32>
    %cst_79 = arith.constant 0.00999999977 : f32
    %113 = vector.broadcast %cst_79 : f32 to vector<32x128xf32>
    %114 = arith.mulf %113, %110 : vector<32x128xf32>
    %115 = arith.select %112, %110, %114 : vector<32x128xi1>, vector<32x128xf32>
    %c0_80 = arith.constant 0 : index
    %c0_81 = arith.constant 0 : index
    %116 = vector.load %arg10[%c0_80, %c0_81] : memref<1x128xf32, #tpu.memory_space<vmem>>, vector<1x128xf32>
    %c0_82 = arith.constant 0 : index
    %c0_83 = arith.constant 0 : index
    %117 = vector.load %arg11[%c0_82, %c0_83] : memref<1x128xf32, #tpu.memory_space<vmem>>, vector<1x128xf32>
    %cst_84 = arith.constant dense<0.000000e+00> : vector<128xf32>
    %118 = vector.multi_reduction <add>, %115, %cst_84 [0] : vector<32x128xf32> to vector<128xf32>
    %119 = vector.shape_cast %118 : vector<128xf32> to vector<1x128xf32>
    %120 = arith.mulf %115, %115 : vector<32x128xf32>
    %cst_85 = arith.constant dense<0.000000e+00> : vector<128xf32>
    %121 = vector.multi_reduction <add>, %120, %cst_85 [0] : vector<32x128xf32> to vector<128xf32>
    %122 = vector.shape_cast %121 : vector<128xf32> to vector<1x128xf32>
    %c8_i32_86 = arith.constant 8 : i32
    %123 = tpu.dynamic_rotate %119 by %c8_i32_86 dim 1 : vector<1x128xf32>, i32 -> vector<1x128xf32>
    %124 = arith.addf %119, %123 : vector<1x128xf32>
    %c8_i32_87 = arith.constant 8 : i32
    %125 = tpu.dynamic_rotate %122 by %c8_i32_87 dim 1 : vector<1x128xf32>, i32 -> vector<1x128xf32>
    %126 = arith.addf %122, %125 : vector<1x128xf32>
    %c16_i32_88 = arith.constant 16 : i32
    %127 = tpu.dynamic_rotate %124 by %c16_i32_88 dim 1 : vector<1x128xf32>, i32 -> vector<1x128xf32>
    %128 = arith.addf %124, %127 : vector<1x128xf32>
    %c16_i32_89 = arith.constant 16 : i32
    %129 = tpu.dynamic_rotate %126 by %c16_i32_89 dim 1 : vector<1x128xf32>, i32 -> vector<1x128xf32>
    %130 = arith.addf %126, %129 : vector<1x128xf32>
    %c32_i32_90 = arith.constant 32 : i32
    %131 = tpu.dynamic_rotate %128 by %c32_i32_90 dim 1 : vector<1x128xf32>, i32 -> vector<1x128xf32>
    %132 = arith.addf %128, %131 : vector<1x128xf32>
    %c32_i32_91 = arith.constant 32 : i32
    %133 = tpu.dynamic_rotate %130 by %c32_i32_91 dim 1 : vector<1x128xf32>, i32 -> vector<1x128xf32>
    %134 = arith.addf %130, %133 : vector<1x128xf32>
    %c64_i32_92 = arith.constant 64 : i32
    %135 = tpu.dynamic_rotate %132 by %c64_i32_92 dim 1 : vector<1x128xf32>, i32 -> vector<1x128xf32>
    %136 = arith.addf %132, %135 : vector<1x128xf32>
    %c64_i32_93 = arith.constant 64 : i32
    %137 = tpu.dynamic_rotate %134 by %c64_i32_93 dim 1 : vector<1x128xf32>, i32 -> vector<1x128xf32>
    %138 = arith.addf %134, %137 : vector<1x128xf32>
    %cst_94 = arith.constant 0.001953125 : f32
    %139 = vector.broadcast %cst_94 : f32 to vector<1x128xf32>
    %140 = arith.mulf %136, %139 : vector<1x128xf32>
    %cst_95 = arith.constant 0.001953125 : f32
    %141 = vector.broadcast %cst_95 : f32 to vector<1x128xf32>
    %142 = arith.mulf %138, %141 : vector<1x128xf32>
    %143 = arith.mulf %140, %140 : vector<1x128xf32>
    %144 = arith.subf %142, %143 : vector<1x128xf32>
    %cst_96 = arith.constant 0.000000e+00 : f32
    %145 = vector.broadcast %cst_96 : f32 to vector<1x128xf32>
    %146 = arith.maximumf %144, %145 : vector<1x128xf32>
    %cst_97 = arith.constant 9.99999974E-6 : f32
    %147 = vector.broadcast %cst_97 : f32 to vector<1x128xf32>
    %148 = arith.addf %146, %147 : vector<1x128xf32>
    %149 = math.rsqrt %148 : vector<1x128xf32>
    %150 = arith.mulf %116, %149 : vector<1x128xf32>
    %151 = arith.mulf %140, %150 : vector<1x128xf32>
    %152 = arith.subf %117, %151 : vector<1x128xf32>
    %153 = vector.broadcast %150 : vector<1x128xf32> to vector<32x128xf32>
    %154 = arith.mulf %115, %153 : vector<32x128xf32>
    %155 = vector.broadcast %152 : vector<1x128xf32> to vector<32x128xf32>
    %156 = arith.addf %154, %155 : vector<32x128xf32>
    %157 = arith.addf %10, %156 : vector<32x128xf32>
    %c0_98 = arith.constant 0 : index
    %c0_99 = arith.constant 0 : index
    %158 = vector.load %arg12[%c0_98, %c0_99] : memref<32x128xf32, #tpu.memory_space<vmem>>, vector<32x128xf32>
    tpu.vector_store %arg12[%c0_98, %c0_99], %157 {strides = array<i32>} : memref<32x128xf32, #tpu.memory_space<vmem>>, vector<32x128xf32>,
    return
  }
  func.func @transform_0(%arg0: i32) -> (i32, i32) {
    %c0_i32 = arith.constant 0 : i32
    %c0_i32_0 = arith.constant 0 : i32
    %c0_i32_1 = arith.constant 0 : i32
    return %c0_i32, %c0_i32_0 : i32, i32
  }
  func.func @transform_1(%arg0: i32) -> (i32, i32) {
    %c0_i32 = arith.constant 0 : i32
    %c0_i32_0 = arith.constant 0 : i32
    %c0_i32_1 = arith.constant 0 : i32
    return %c0_i32, %c0_i32_0 : i32, i32
  }
  func.func @transform_2(%arg0: i32) -> (i32, i32) {
    %c0_i32 = arith.constant 0 : i32
    %c0_i32_0 = arith.constant 0 : i32
    %c0_i32_1 = arith.constant 0 : i32
    return %c0_i32, %c0_i32_0 : i32, i32
  }
  func.func @transform_3(%arg0: i32) -> (i32, i32, i32) {
    %c0_i32 = arith.constant 0 : i32
    %c0_i32_0 = arith.constant 0 : i32
    %c0_i32_1 = arith.constant 0 : i32
    %c0_i32_2 = arith.constant 0 : i32
    return %c0_i32, %c0_i32_0, %c0_i32_1 : i32, i32, i32
  }
  func.func @transform_4(%arg0: i32) -> (i32, i32) {
    %c0_i32 = arith.constant 0 : i32
    %c0_i32_0 = arith.constant 0 : i32
    %c0_i32_1 = arith.constant 0 : i32
    return %c0_i32, %c0_i32_0 : i32, i32
  }
  func.func @transform_5(%arg0: i32) -> (i32, i32, i32) {
    %c0_i32 = arith.constant 0 : i32
    %c0_i32_0 = arith.constant 0 : i32
    %c0_i32_1 = arith.constant 0 : i32
    %c0_i32_2 = arith.constant 0 : i32
    return %c0_i32, %c0_i32_0, %c0_i32_1 : i32, i32, i32
  }
  func.func @transform_6(%arg0: i32) -> (i32, i32) {
    %c0_i32 = arith.constant 0 : i32
    %c0_i32_0 = arith.constant 0 : i32
    %c0_i32_1 = arith.constant 0 : i32
    return %c0_i32, %c0_i32_0 : i32, i32
  }
  func.func @transform_7(%arg0: i32) -> (i32, i32) {
    %c0_i32 = arith.constant 0 : i32
    %c0_i32_0 = arith.constant 0 : i32
    %c0_i32_1 = arith.constant 0 : i32
    return %c0_i32, %c0_i32_0 : i32, i32
  }
  func.func @transform_8(%arg0: i32) -> (i32, i32) {
    %c0_i32 = arith.constant 0 : i32
    %c0_i32_0 = arith.constant 0 : i32
    %c0_i32_1 = arith.constant 0 : i32
    return %c0_i32, %c0_i32_0 : i32, i32
  }
  func.func @transform_9(%arg0: i32) -> (i32, i32) {
    %c0_i32 = arith.constant 0 : i32
    %c0_i32_0 = arith.constant 0 : i32
    %c0_i32_1 = arith.constant 0 : i32
    return %c0_i32, %c0_i32_0 : i32, i32
  }
  func.func @transform_10(%arg0: i32) -> (i32, i32) {
    %c0_i32 = arith.constant 0 : i32
    %c0_i32_0 = arith.constant 0 : i32
    %c0_i32_1 = arith.constant 0 : i32
    return %c0_i32, %c0_i32_0 : i32, i32
  }
  func.func @transform_11(%arg0: i32) -> (i32, i32) {
    %c0_i32 = arith.constant 0 : i32
    %c0_i32_0 = arith.constant 0 : i32
    %c0_i32_1 = arith.constant 0 : i32
    return %c0_i32, %c0_i32_0 : i32, i32
  }
}

</mosaic_0001>

<llo_original>
// kernel: tpu_custom_call.1
$region0: #{tpu_custom_call.1}
  #allocation0 [shape = 'u32[]', space=smem, size = 0x4, offset = 0x4, fixed_abs, tag = 'smem constant byte address 0x4 - core index']
  #allocation1 [shape = 'u32[144,128]{1,0:T(1,128)}', space=vmem, size = 0x12000, scoped, tag = 'internal scratch']
  #allocation2 [shape = 'f32[2,20,128]{2,1,0:T(8,128)}', space=vmem, size = 0x6000, scoped, tag = 'scratch operand']
  %s0 = inlined_call_operand.hbm [shape: bf16[32,64], index: 0, kind: input, shape index: {}]
  %s1 = inlined_call_operand.hbm [shape: bf16[64,128], index: 1, kind: input, shape index: {}]
  %s2 = inlined_call_operand.vmem [shape: f32[1,128], index: 2, kind: input, shape index: {}]
  %s3 = inlined_call_operand.hbm [shape: bf16[3,128,128], index: 3, kind: input, shape index: {}]
  %s4 = inlined_call_operand.vmem [shape: f32[1,128], index: 4, kind: input, shape index: {}]
  %s5 = inlined_call_operand.hbm [shape: bf16[3,128,128], index: 5, kind: input, shape index: {}]
  %s6 = inlined_call_operand.vmem [shape: f32[1,128], index: 6, kind: input, shape index: {}]
  %s7 = inlined_call_operand.vmem [shape: f32[1,128], index: 7, kind: input, shape index: {}]
  %s8 = inlined_call_operand.vmem [shape: f32[1,128], index: 8, kind: input, shape index: {}]
  %s9 = inlined_call_operand.vmem [shape: f32[1,128], index: 9, kind: input, shape index: {}]
  %s10 = inlined_call_operand.vmem [shape: f32[1,128], index: 10, kind: input, shape index: {}]
  %s11 = inlined_call_operand.hbm [shape: f32[32,128], index: 11, kind: output, shape index: {}]
  %s12 = sld [smem:[#allocation0]]
  $region70: #{tpu_custom_call.1} parent=0
    _
  %s14 = ssub.s32 1, %s12
  %s15 = scalar_select 0, %s14, %s12
  $region1: #{tpu_custom_call.1} parent=0
    #allocation3 [shape = 'u8[8192]{0}', space=vmem, size = 0x2000, scoped, tag = 'input window, operand 0, single buffered']
    #allocation4 [shape = 's32[1]{0}', space=sflag, size = 0x4, scoped, tag = 'scoped memory for tpu_custom_call.1']
    #allocation5 [shape = 's32[1]{0}', space=sflag, size = 0x4, scoped, tag = 'scoped memory for tpu_custom_call.1']
    #allocation6 [shape = 'u8[16384]{0}', space=vmem, size = 0x4000, scoped, tag = 'input window, operand 1, single buffered']
    #allocation7 [shape = 's32[1]{0}', space=sflag, size = 0x4, scoped, tag = 'scoped memory for tpu_custom_call.1']
    #allocation8 [shape = 'u8[98304]{0}', space=vmem, size = 0x18000, scoped, tag = 'input window, operand 3, single buffered']
    #allocation9 [shape = 'u8[98304]{0}', space=vmem, size = 0x18000, scoped, tag = 'input window, operand 5, single buffered']
    #allocation10 [shape = 's32[1]{0}', space=sflag, size = 0x4, scoped, tag = 'scoped memory for tpu_custom_call.1']
    #allocation11 [shape = 'u8[16384]{0}', space=vmem, size = 0x4000, scoped, tag = 'output window, operand 0, single buffered']
    %16 = vsyncpa [#allocation4], 0
    %17 = vsyncpa [#allocation7], 0
    %18 = vsyncpa [#allocation10], 0
    %19 = vsyncpa [#allocation5], 0
    // Predicated region
    $region2: #{tpu_custom_call.1} parent=1 // pred_check
      _
    $region3: #{tpu_custom_call.1} parent=1 // pred_check_branch
      %21 = sbr.rel (0) target = $region5
    $region4: #{tpu_custom_call.1} parent=1 // pred_region
      %s23 = ssub.s32 256, 256
      %24 = vsyncadd [#allocation4], %s23
      %s25 = sshll.u32 [#allocation3], 4
      %s26 = int_to_ptr.vmem [resolvable:$true] %s25
      %31 = dma.hbm_to_vmem [thread:$0]  %s0, 256, %s26, [#allocation4], 64, 64, 4
    $region5: #{tpu_custom_call.1} parent=1 // pred_fallthru
      _
    // Predicated region
    $region6: #{tpu_custom_call.1} parent=1 // pred_check
      _
    $region7: #{tpu_custom_call.1} parent=1 // pred_check_branch
      %33 = sbr.rel (0) target = $region9
    $region8: #{tpu_custom_call.1} parent=1 // pred_region
      %s35 = ssub.s32 512, 512
      %36 = vsyncadd [#allocation7], %s35
      %s37 = sshll.u32 [#allocation6], 4
      %s38 = int_to_ptr.vmem [resolvable:$true] %s37
      %43 = dma.hbm_to_vmem [thread:$0]  %s1, 512, %s38, [#allocation7], 64, 64, 4
    $region9: #{tpu_custom_call.1} parent=1 // pred_fallthru
      _
    // Predicated region
    $region10: #{tpu_custom_call.1} parent=1 // pred_check
      _
    $region11: #{tpu_custom_call.1} parent=1 // pred_check_branch
      %45 = sbr.rel (0) target = $region13
    $region12: #{tpu_custom_call.1} parent=1 // pred_region
      _
    $region13: #{tpu_custom_call.1} parent=1 // pred_fallthru
      _
    // Predicated region
    $region14: #{tpu_custom_call.1} parent=1 // pred_check
      _
    $region15: #{tpu_custom_call.1} parent=1 // pred_check_branch
      %47 = sbr.rel (0) target = $region17
    $region16: #{tpu_custom_call.1} parent=1 // pred_region
      %s49 = ssub.s32 3072, 3072
      %50 = vsyncadd [#allocation7], %s49
      %s51 = sshll.u32 [#allocation8], 4
      %s52 = int_to_ptr.vmem [resolvable:$true] %s51
      %57 = dma.hbm_to_vmem [thread:$0]  %s3, 3072, %s52, [#allocation7], 64, 64, 4
    $region17: #{tpu_custom_call.1} parent=1 // pred_fallthru
      _
    // Predicated region
    $region18: #{tpu_custom_call.1} parent=1 // pred_check
      _
    $region19: #{tpu_custom_call.1} parent=1 // pred_check_branch
      %59 = sbr.rel (0) target = $region21
    $region20: #{tpu_custom_call.1} parent=1 // pred_region
      _
    $region21: #{tpu_custom_call.1} parent=1 // pred_fallthru
      _
    // Predicated region
    $region22: #{tpu_custom_call.1} parent=1 // pred_check
      _
    $region23: #{tpu_custom_call.1} parent=1 // pred_check_branch
      %61 = sbr.rel (0) target = $region25
    $region24: #{tpu_custom_call.1} parent=1 // pred_region
      %s63 = ssub.s32 3072, 3072
      %64 = vsyncadd [#allocation10], %s63
      %s65 = sshll.u32 [#allocation9], 4
      %s66 = int_to_ptr.vmem [resolvable:$true] %s65
      %71 = dma.hbm_to_vmem [thread:$0]  %s5, 3072, %s66, [#allocation10], 64, 64, 4
    $region25: #{tpu_custom_call.1} parent=1 // pred_fallthru
      _
    // Predicated region
    $region26: #{tpu_custom_call.1} parent=1 // pred_check
      _
    $region27: #{tpu_custom_call.1} parent=1 // pred_check_branch
      %73 = sbr.rel (0) target = $region29
    $region28: #{tpu_custom_call.1} parent=1 // pred_region
      _
    $region29: #{tpu_custom_call.1} parent=1 // pred_fallthru
      _
    // Predicated region
    $region30: #{tpu_custom_call.1} parent=1 // pred_check
      _
    $region31: #{tpu_custom_call.1} parent=1 // pred_check_branch
      %75 = sbr.rel (0) target = $region33
    $region32: #{tpu_custom_call.1} parent=1 // pred_region
      _
    $region33: #{tpu_custom_call.1} parent=1 // pred_fallthru
      _
    // Predicated region
    $region34: #{tpu_custom_call.1} parent=1 // pred_check
      _
    $region35: #{tpu_custom_call.1} parent=1 // pred_check_branch
      %77 = sbr.rel (0) target = $region37
    $region36: #{tpu_custom_call.1} parent=1 // pred_region
      _
    $region37: #{tpu_custom_call.1} parent=1 // pred_fallthru
      _
    // Predicated region
    $region38: #{tpu_custom_call.1} parent=1 // pred_check
      _
    $region39: #{tpu_custom_call.1} parent=1 // pred_check_branch
      %79 = sbr.rel (0) target = $region41
    $region40: #{tpu_custom_call.1} parent=1 // pred_region
      _
    $region41: #{tpu_custom_call.1} parent=1 // pred_fallthru
      _
    // Predicated region
    $region42: #{tpu_custom_call.1} parent=1 // pred_check
      _
    $region43: #{tpu_custom_call.1} parent=1 // pred_check_branch
      %81 = sbr.rel (0) target = $region45
    $region44: #{tpu_custom_call.1} parent=1 // pred_region
      _
    $region45: #{tpu_custom_call.1} parent=1 // pred_fallthru
      _
    // Predicated region
    $region46: #{tpu_custom_call.1} parent=1 // pred_check
      _
    $region47: #{tpu_custom_call.1} parent=1 // pred_check_branch
      %83 = sbr.rel (0) target = $region49
    $region48: #{tpu_custom_call.1} parent=1 // pred_region
      %84 = dma.done [#allocation4], 256
    $region49: #{tpu_custom_call.1} parent=1 // pred_fallthru
      _
    // Predicated region
    $region50: #{tpu_custom_call.1} parent=1 // pred_check
      _
    $region51: #{tpu_custom_call.1} parent=1 // pred_check_branch
      %86 = sbr.rel (0) target = $region53
    $region52: #{tpu_custom_call.1} parent=1 // pred_region
      %87 = dma.done [#allocation7], 512
    $region53: #{tpu_custom_call.1} parent=1 // pred_fallthru
      _
    // Predicated region
    $region54: #{tpu_custom_call.1} parent=1 // pred_check
      _
    $region55: #{tpu_custom_call.1} parent=1 // pred_check_branch
      %89 = sbr.rel (0) target = $region57
    $region56: #{tpu_custom_call.1} parent=1 // pred_region
      %90 = dma.done [#allocation7], 3072
    $region57: #{tpu_custom_call.1} parent=1 // pred_fallthru
      _
    // Predicated region
    $region58: #{tpu_custom_call.1} parent=1 // pred_check
      _
    $region59: #{tpu_custom_call.1} parent=1 // pred_check_branch
      %92 = sbr.rel (0) target = $region61
    $region60: #{tpu_custom_call.1} parent=1 // pred_region
      %93 = dma.done [#allocation10], 3072
    $region61: #{tpu_custom_call.1} parent=1 // pred_fallthru
      _
    %v95 = vld [vmem:[#allocation3] sm:$0xf]
    %v96 = vld [vmem:[#allocation3 + $0x4] sm:$0xf]
    %v97 = vld [vmem:[#allocation3 + $0x8] sm:$0xf]
    %v98 = vld [vmem:[#allocation3 + $0xc] sm:$0xf]
    %v99 = vld [vmem:[#allocation6] sm:$0xf]
    %v100 = vld [vmem:[#allocation6 + $0x4] sm:$0xf]
    %v101 = vld [vmem:[#allocation6 + $0x8] sm:$0xf]
    %v102 = vld [vmem:[#allocation6 + $0xc] sm:$0xf]
    %v103 = vld [vmem:[#allocation6 + $0x10] sm:$0xf]
    %v104 = vld [vmem:[#allocation6 + $0x14] sm:$0xf]
    %v105 = vld [vmem:[#allocation6 + $0x18] sm:$0xf]
    %v106 = vld [vmem:[#allocation6 + $0x1c] sm:$0xf]
    %v107 = vld [vmem:[%s2] sm:$0x1]
    %v109 = vlaneseq
    %v110 = vshrl.u32 %v109, 7
    %v111 = vsub.s32 0, %v110
    %v112 = vrot.slane %v107, %v111
    %v118 = vunpack.c.l.b16 %v95
    %v119 = vunpack.c.l.b16 %v96
    %v120 = vunpack.c.l.b16 %v97
    %v121 = vunpack.c.l.b16 %v98
    %v122 = vpack.c.b16 %v119, %v118
    %v123 = vpack.c.b16 %v121, %v120
    %v132 = vunpack.c.l.b16 %v99
    %v133 = vunpack.c.l.b16 %v100
    %v134 = vunpack.c.l.b16 %v101
    %v135 = vunpack.c.l.b16 %v102
    %v136 = vunpack.c.l.b16 %v103
    %v137 = vunpack.c.l.b16 %v104
    %v138 = vunpack.c.l.b16 %v105
    %v139 = vunpack.c.l.b16 %v106
    %v140 = vpack.c.b16 %v133, %v132
    %v141 = vpack.c.b16 %v135, %v134
    %v142 = vpack.c.b16 %v137, %v136
    %v143 = vpack.c.b16 %v139, %v138
    %vm148 = vcmask 523264
    %v150 = vsel %vm148, %v122, 0
    %v153 = vsel %vm148, %v123, 0
    %155 = vmatprep.subr.bf16.mxu0 0
    %156 = vmatpush1.bf16.msra.mxu0 %v140
    %157 = vmatprep.subr.bf16.mxu0 0
    %158 = vmatpush1.bf16.msra.mxu0 %v141
    %159 = vmatprep.subr.bf16.mxu0 0
    %160 = vmatpush1.bf16.msra.mxu0 %v142
    %161 = vmatprep.subr.bf16.mxu0 0
    %162 = vmatpush1.bf16.msra.mxu0 %v143
    %163 = vmatprep.subr.bf16.mxu0 0
    %164 = vmatpush1.bf16.msra.mxu0 0
    %165 = vmatprep.subr.bf16.mxu0 0
    %166 = vmatpush1.bf16.msra.mxu0 0
    %167 = vmatprep.subr.bf16.mxu0 0
    %168 = vmatpush1.bf16.msra.mxu0 0
    %169 = vmatprep.subr.bf16.mxu0 0
    %170 = vmatpush1.bf16.msra.mxu0 0
    %171 = vmatprep.subr.bf16.mxu0 0
    %172 = vmatpush1.bf16.msra.mxu0 0
    %173 = vmatprep.subr.bf16.mxu0 0
    %174 = vmatpush1.bf16.msra.mxu0 0
    %175 = vmatprep.subr.bf16.mxu0 0
    %176 = vmatpush1.bf16.msra.mxu0 0
    %177 = vmatprep.subr.bf16.mxu0 0
    %178 = vmatpush1.bf16.msra.mxu0 0
    %179 = vmatprep.subr.bf16.mxu0 0
    %180 = vmatpush1.bf16.msra.mxu0 0
    %181 = vmatprep.subr.bf16.mxu0 0
    %182 = vmatpush1.bf16.msra.mxu0 0
    %183 = vmatprep.subr.bf16.mxu0 0
    %184 = vmatpush1.bf16.msra.mxu0 0
    %185 = vmatprep.subr.bf16.mxu0 0
    %186 = vmatpush1.bf16.msra.mxu0 0
    %187 = vmatprep.mubr.bf16.mxu0 0
    %188 = vmatmul.mubr.bf16.gmra.mrb[0].mxu0 %v150
    %v189 = vpop.f32.mrb[0].mxu0
    %v190 = vadd.f32 %v112, %v189
    %v191 = vpop.f32.mrb[0].mxu0
    %v192 = vpop.f32.mrb[0].mxu0
    %v193 = vadd.f32 %v112, %v192
    %v194 = vpop.f32.mrb[0].mxu0
    %195 = vmatprep.mubr.bf16.mxu0 0
    %196 = vmatmul.mubr.bf16.gmra.mrb[0].mxu0 %v153
    %v197 = vpop.f32.mrb[0].mxu0
    %v198 = vadd.f32 %v112, %v197
    %v199 = vpop.f32.mrb[0].mxu0
    %v200 = vpop.f32.mrb[0].mxu0
    %v201 = vadd.f32 %v112, %v200
    %v202 = vpop.f32.mrb[0].mxu0
    %203 = vdwg.mxu0
    %vm204 = vcmp.ge.f32.partialorder %v190, 0.0
    %vm205 = vcmp.ge.f32.partialorder %v193, 0.0
    %vm206 = vcmp.ge.f32.partialorder %v198, 0.0
    %vm207 = vcmp.ge.f32.partialorder %v201, 0.0
    %v208 = vmul.f32 %v190, 0.01
    %v209 = vmul.f32 %v193, 0.01
    %v210 = vmul.f32 %v198, 0.01
    %v211 = vmul.f32 %v201, 0.01
    %v212 = vsel %vm204, %v190, %v208
    %v213 = vsel %vm205, %v193, %v209
    %v214 = vsel %vm206, %v198, %v210
    %v215 = vsel %vm207, %v201, %v211
    %216 = vst [vmem:[#allocation2] sm:$0x3] 0.0
    %217 = vst [vmem:[#allocation2 + $0x18] sm:$0x3] 0.0
    %218 = vst [vmem:[#allocation2 + $0x12] sm:$0x3] 0.0
    %219 = vst [vmem:[#allocation2 + $0x2a] sm:$0x3] 0.0
    %220 = vst [vmem:[#allocation2 + $0x2] sm:$0xff] %v212
    %221 = vst [vmem:[#allocation2 + $0xa] sm:$0xff] %v213
    %222 = vst [vmem:[#allocation2 + $0x1a] sm:$0xff] %v214
    %223 = vst [vmem:[#allocation2 + $0x22] sm:$0xff] %v215
    %v224 = vld [vmem:[#allocation2 + $0x1] sm:$0xff]
    %v225 = vld [vmem:[#allocation2 + $0x9] sm:$0xff]
    %v226 = vld [vmem:[#allocation2 + $0x19] sm:$0xff]
    %v227 = vld [vmem:[#allocation2 + $0x21] sm:$0xff]
    %v228 = vpack.c.bf16 %v225, %v224
    %v229 = vpack.c.bf16 %v227, %v226
    %v230 = vld [vmem:[#allocation8] sm:$0xf]
    %v231 = vld [vmem:[#allocation8 + $0x4] sm:$0xf]
    %v232 = vld [vmem:[#allocation8 + $0x8] sm:$0xf]
    %v233 = vld [vmem:[#allocation8 + $0xc] sm:$0xf]
    %v234 = vld [vmem:[#allocation8 + $0x10] sm:$0xf]
    %v235 = vld [vmem:[#allocation8 + $0x14] sm:$0xf]
    %v236 = vld [vmem:[#allocation8 + $0x18] sm:$0xf]
    %v237 = vld [vmem:[#allocation8 + $0x1c] sm:$0xf]
    %v238 = vld [vmem:[#allocation8 + $0x20] sm:$0xf]
    %v239 = vld [vmem:[#allocation8 + $0x24] sm:$0xf]
    %v240 = vld [vmem:[#allocation8 + $0x28] sm:$0xf]
    %v241 = vld [vmem:[#allocation8 + $0x2c] sm:$0xf]
    %v242 = vld [vmem:[#allocation8 + $0x30] sm:$0xf]
    %v243 = vld [vmem:[#allocation8 + $0x34] sm:$0xf]
    %v244 = vld [vmem:[#allocation8 + $0x38] sm:$0xf]
    %v245 = vld [vmem:[#allocation8 + $0x3c] sm:$0xf]
    %v246 = vld [vmem:[#allocation2 + $0x2] sm:$0xff]
    %v247 = vld [vmem:[#allocation2 + $0xa] sm:$0xff]
    %v248 = vld [vmem:[#allocation2 + $0x1a] sm:$0xff]
    %v249 = vld [vmem:[#allocation2 + $0x22] sm:$0xff]
    %v250 = vpack.c.bf16 %v247, %v246
    %v251 = vpack.c.bf16 %v249, %v248
    %s252 = scalar_lea.vmem [#allocation8], 64
    %v253 = vld [vmem:[%s252] sm:$0xf]
    %v254 = vld [vmem:[%s252 + $0x4] sm:$0xf]
    %v255 = vld [vmem:[%s252 + $0x8] sm:$0xf]
    %v256 = vld [vmem:[%s252 + $0xc] sm:$0xf]
    %v257 = vld [vmem:[%s252 + $0x10] sm:$0xf]
    %v258 = vld [vmem:[%s252 + $0x14] sm:$0xf]
    %v259 = vld [vmem:[%s252 + $0x18] sm:$0xf]
    %v260 = vld [vmem:[%s252 + $0x1c] sm:$0xf]
    %v261 = vld [vmem:[%s252 + $0x20] sm:$0xf]
    %v262 = vld [vmem:[%s252 + $0x24] sm:$0xf]
    %v263 = vld [vmem:[%s252 + $0x28] sm:$0xf]
    %v264 = vld [vmem:[%s252 + $0x2c] sm:$0xf]
    %v265 = vld [vmem:[%s252 + $0x30] sm:$0xf]
    %v266 = vld [vmem:[%s252 + $0x34] sm:$0xf]
    %v267 = vld [vmem:[%s252 + $0x38] sm:$0xf]
    %v268 = vld [vmem:[%s252 + $0x3c] sm:$0xf]
    %v285 = vunpack.c.l.b16 %v253
    %v286 = vunpack.c.l.b16 %v254
    %v287 = vunpack.c.l.b16 %v255
    %v288 = vunpack.c.l.b16 %v256
    %v289 = vunpack.c.l.b16 %v257
    %v290 = vunpack.c.l.b16 %v258
    %v291 = vunpack.c.l.b16 %v259
    %v292 = vunpack.c.l.b16 %v260
    %v293 = vunpack.c.l.b16 %v261
    %v294 = vunpack.c.l.b16 %v262
    %v295 = vunpack.c.l.b16 %v263
    %v296 = vunpack.c.l.b16 %v264
    %v297 = vunpack.c.l.b16 %v265
    %v298 = vunpack.c.l.b16 %v266
    %v299 = vunpack.c.l.b16 %v267
    %v300 = vunpack.c.l.b16 %v268
    %v301 = vpack.c.b16 %v286, %v285
    %v302 = vpack.c.b16 %v288, %v287
    %v303 = vpack.c.b16 %v290, %v289
    %v304 = vpack.c.b16 %v292, %v291
    %v305 = vpack.c.b16 %v294, %v293
    %v306 = vpack.c.b16 %v296, %v295
    %v307 = vpack.c.b16 %v298, %v297
    %v308 = vpack.c.b16 %v300, %v299
    %317 = vmatprep.subr.bf16.mxu0 0
    %318 = vmatpush1.bf16.msra.mxu0 %v301
    %319 = vmatprep.subr.bf16.mxu0 0
    %320 = vmatpush1.bf16.msra.mxu0 %v302
    %321 = vmatprep.subr.bf16.mxu0 0
    %322 = vmatpush1.bf16.msra.mxu0 %v303
    %323 = vmatprep.subr.bf16.mxu0 0
    %324 = vmatpush1.bf16.msra.mxu0 %v304
    %325 = vmatprep.subr.bf16.mxu0 0
    %326 = vmatpush1.bf16.msra.mxu0 %v305
    %327 = vmatprep.subr.bf16.mxu0 0
    %328 = vmatpush1.bf16.msra.mxu0 %v306
    %329 = vmatprep.subr.bf16.mxu0 0
    %330 = vmatpush1.bf16.msra.mxu0 %v307
    %331 = vmatprep.subr.bf16.mxu0 0
    %332 = vmatpush1.bf16.msra.mxu0 %v308
    %333 = vmatprep.subr.bf16.mxu0 0
    %334 = vmatpush1.bf16.msra.mxu0 0
    %335 = vmatprep.subr.bf16.mxu0 0
    %336 = vmatpush1.bf16.msra.mxu0 0
    %337 = vmatprep.subr.bf16.mxu0 0
    %338 = vmatpush1.bf16.msra.mxu0 0
    %339 = vmatprep.subr.bf16.mxu0 0
    %340 = vmatpush1.bf16.msra.mxu0 0
    %341 = vmatprep.subr.bf16.mxu0 0
    %342 = vmatpush1.bf16.msra.mxu0 0
    %343 = vmatprep.subr.bf16.mxu0 0
    %344 = vmatpush1.bf16.msra.mxu0 0
    %345 = vmatprep.subr.bf16.mxu0 0
    %346 = vmatpush1.bf16.msra.mxu0 0
    %347 = vmatprep.subr.bf16.mxu0 0
    %348 = vmatpush1.bf16.msra.mxu0 0
    %349 = vmatprep.mubr.bf16.mxu0 0
    %350 = vmatmul.mubr.bf16.gmra.mrb[0].mxu0 %v250
    %v351 = vpop.f32.mrb[0].mxu0
    %v352 = vadd.f32 0.0, %v351
    %v353 = vpop.f32.mrb[0].mxu0
    %v354 = vpop.f32.mrb[0].mxu0
    %v355 = vadd.f32 0.0, %v354
    %v356 = vpop.f32.mrb[0].mxu0
    %357 = vmatprep.mubr.bf16.mxu0 0
    %358 = vmatmul.mubr.bf16.gmra.mrb[0].mxu0 %v251
    %v359 = vpop.f32.mrb[0].mxu0
    %v360 = vadd.f32 0.0, %v359
    %v361 = vpop.f32.mrb[0].mxu0
    %v362 = vpop.f32.mrb[0].mxu0
    %v363 = vadd.f32 0.0, %v362
    %v364 = vpop.f32.mrb[0].mxu0
    %365 = vdwg.mxu0
    %v366 = vld [vmem:[#allocation2 + $0x3] sm:$0xff]
    %v367 = vld [vmem:[#allocation2 + $0xb] sm:$0xff]
    %v368 = vld [vmem:[#allocation2 + $0x1b] sm:$0xff]
    %v369 = vld [vmem:[#allocation2 + $0x23] sm:$0xff]
    %v370 = vpack.c.bf16 %v367, %v366
    %v371 = vpack.c.bf16 %v369, %v368
    %s372 = scalar_lea.vmem [#allocation8], 128
    %v373 = vld [vmem:[%s372] sm:$0xf]
    %v374 = vld [vmem:[%s372 + $0x4] sm:$0xf]
    %v375 = vld [vmem:[%s372 + $0x8] sm:$0xf]
    %v376 = vld [vmem:[%s372 + $0xc] sm:$0xf]
    %v377 = vld [vmem:[%s372 + $0x10] sm:$0xf]
    %v378 = vld [vmem:[%s372 + $0x14] sm:$0xf]
    %v379 = vld [vmem:[%s372 + $0x18] sm:$0xf]
    %v380 = vld [vmem:[%s372 + $0x1c] sm:$0xf]
    %v381 = vld [vmem:[%s372 + $0x20] sm:$0xf]
    %v382 = vld [vmem:[%s372 + $0x24] sm:$0xf]
    %v383 = vld [vmem:[%s372 + $0x28] sm:$0xf]
    %v384 = vld [vmem:[%s372 + $0x2c] sm:$0xf]
    %v385 = vld [vmem:[%s372 + $0x30] sm:$0xf]
    %v386 = vld [vmem:[%s372 + $0x34] sm:$0xf]
    %v387 = vld [vmem:[%s372 + $0x38] sm:$0xf]
    %v388 = vld [vmem:[%s372 + $0x3c] sm:$0xf]
    %v405 = vunpack.c.l.b16 %v373
    %v406 = vunpack.c.l.b16 %v374
    %v407 = vunpack.c.l.b16 %v375
    %v408 = vunpack.c.l.b16 %v376
    %v409 = vunpack.c.l.b16 %v377
    %v410 = vunpack.c.l.b16 %v378
    %v411 = vunpack.c.l.b16 %v379
    %v412 = vunpack.c.l.b16 %v380
    %v413 = vunpack.c.l.b16 %v381
    %v414 = vunpack.c.l.b16 %v382
    %v415 = vunpack.c.l.b16 %v383
    %v416 = vunpack.c.l.b16 %v384
    %v417 = vunpack.c.l.b16 %v385
    %v418 = vunpack.c.l.b16 %v386
    %v419 = vunpack.c.l.b16 %v387
    %v420 = vunpack.c.l.b16 %v388
    %v421 = vpack.c.b16 %v406, %v405
    %v422 = vpack.c.b16 %v408, %v407
    %v423 = vpack.c.b16 %v410, %v409
    %v424 = vpack.c.b16 %v412, %v411
    %v425 = vpack.c.b16 %v414, %v413
    %v426 = vpack.c.b16 %v416, %v415
    %v427 = vpack.c.b16 %v418, %v417
    %v428 = vpack.c.b16 %v420, %v419
    %437 = vmatprep.subr.bf16.mxu0 0
    %438 = vmatpush1.bf16.msra.mxu0 %v421
    %439 = vmatprep.subr.bf16.mxu0 0
    %440 = vmatpush1.bf16.msra.mxu0 %v422
    %441 = vmatprep.subr.bf16.mxu0 0
    %442 = vmatpush1.bf16.msra.mxu0 %v423
    %443 = vmatprep.subr.bf16.mxu0 0
    %444 = vmatpush1.bf16.msra.mxu0 %v424
    %445 = vmatprep.subr.bf16.mxu0 0
    %446 = vmatpush1.bf16.msra.mxu0 %v425
    %447 = vmatprep.subr.bf16.mxu0 0
    %448 = vmatpush1.bf16.msra.mxu0 %v426
    %449 = vmatprep.subr.bf16.mxu0 0
    %450 = vmatpush1.bf16.msra.mxu0 %v427
    %451 = vmatprep.subr.bf16.mxu0 0
    %452 = vmatpush1.bf16.msra.mxu0 %v428
    %453 = vmatprep.subr.bf16.mxu0 0
    %454 = vmatpush1.bf16.msra.mxu0 0
    %455 = vmatprep.subr.bf16.mxu0 0
    %456 = vmatpush1.bf16.msra.mxu0 0
    %457 = vmatprep.subr.bf16.mxu0 0
    %458 = vmatpush1.bf16.msra.mxu0 0
    %459 = vmatprep.subr.bf16.mxu0 0
    %460 = vmatpush1.bf16.msra.mxu0 0
    %461 = vmatprep.subr.bf16.mxu0 0
    %462 = vmatpush1.bf16.msra.mxu0 0
    %463 = vmatprep.subr.bf16.mxu0 0
    %464 = vmatpush1.bf16.msra.mxu0 0
    %465 = vmatprep.subr.bf16.mxu0 0
    %466 = vmatpush1.bf16.msra.mxu0 0
    %467 = vmatprep.subr.bf16.mxu0 0
    %468 = vmatpush1.bf16.msra.mxu0 0
    %469 = vmatprep.mubr.bf16.mxu0 0
    %470 = vmatmul.mubr.bf16.gmra.mrb[0].mxu0 %v370
    %v471 = vpop.f32.mrb[0].mxu0
    %v472 = vadd.f32 0.0, %v471
    %v473 = vpop.f32.mrb[0].mxu0
    %v474 = vpop.f32.mrb[0].mxu0
    %v475 = vadd.f32 0.0, %v474
    %v476 = vpop.f32.mrb[0].mxu0
    %477 = vmatprep.mubr.bf16.mxu0 0
    %478 = vmatmul.mubr.bf16.gmra.mrb[0].mxu0 %v371
    %v479 = vpop.f32.mrb[0].mxu0
    %v480 = vadd.f32 0.0, %v479
    %v481 = vpop.f32.mrb[0].mxu0
    %v482 = vpop.f32.mrb[0].mxu0
    %v483 = vadd.f32 0.0, %v482
    %v484 = vpop.f32.mrb[0].mxu0
    %485 = vdwg.mxu0
    %v502 = vunpack.c.l.b16 %v230
    %v503 = vunpack.c.l.b16 %v231
    %v504 = vunpack.c.l.b16 %v232
    %v505 = vunpack.c.l.b16 %v233
    %v506 = vunpack.c.l.b16 %v234
    %v507 = vunpack.c.l.b16 %v235
    %v508 = vunpack.c.l.b16 %v236
    %v509 = vunpack.c.l.b16 %v237
    %v510 = vunpack.c.l.b16 %v238
    %v511 = vunpack.c.l.b16 %v239
    %v512 = vunpack.c.l.b16 %v240
    %v513 = vunpack.c.l.b16 %v241
    %v514 = vunpack.c.l.b16 %v242
    %v515 = vunpack.c.l.b16 %v243
    %v516 = vunpack.c.l.b16 %v244
    %v517 = vunpack.c.l.b16 %v245
    %v518 = vpack.c.b16 %v503, %v502
    %v519 = vpack.c.b16 %v505, %v504
    %v520 = vpack.c.b16 %v507, %v506
    %v521 = vpack.c.b16 %v509, %v508
    %v522 = vpack.c.b16 %v511, %v510
    %v523 = vpack.c.b16 %v513, %v512
    %v524 = vpack.c.b16 %v515, %v514
    %v525 = vpack.c.b16 %v517, %v516
    %534 = vmatprep.subr.bf16.mxu0 0
    %535 = vmatpush1.bf16.msra.mxu0 %v518
    %536 = vmatprep.subr.bf16.mxu0 0
    %537 = vmatpush1.bf16.msra.mxu0 %v519
    %538 = vmatprep.subr.bf16.mxu0 0
    %539 = vmatpush1.bf16.msra.mxu0 %v520
    %540 = vmatprep.subr.bf16.mxu0 0
    %541 = vmatpush1.bf16.msra.mxu0 %v521
    %542 = vmatprep.subr.bf16.mxu0 0
    %543 = vmatpush1.bf16.msra.mxu0 %v522
    %544 = vmatprep.subr.bf16.mxu0 0
    %545 = vmatpush1.bf16.msra.mxu0 %v523
    %546 = vmatprep.subr.bf16.mxu0 0
    %547 = vmatpush1.bf16.msra.mxu0 %v524
    %548 = vmatprep.subr.bf16.mxu0 0
    %549 = vmatpush1.bf16.msra.mxu0 %v525
    %550 = vmatprep.subr.bf16.mxu0 0
    %551 = vmatpush1.bf16.msra.mxu0 0
    %552 = vmatprep.subr.bf16.mxu0 0
    %553 = vmatpush1.bf16.msra.mxu0 0
    %554 = vmatprep.subr.bf16.mxu0 0
    %555 = vmatpush1.bf16.msra.mxu0 0
    %556 = vmatprep.subr.bf16.mxu0 0
    %557 = vmatpush1.bf16.msra.mxu0 0
    %558 = vmatprep.subr.bf16.mxu0 0
    %559 = vmatpush1.bf16.msra.mxu0 0
    %560 = vmatprep.subr.bf16.mxu0 0
    %561 = vmatpush1.bf16.msra.mxu0 0
    %562 = vmatprep.subr.bf16.mxu0 0
    %563 = vmatpush1.bf16.msra.mxu0 0
    %564 = vmatprep.subr.bf16.mxu0 0
    %565 = vmatpush1.bf16.msra.mxu0 0
    %566 = vmatprep.mubr.bf16.mxu0 0
    %567 = vmatmul.mubr.bf16.gmra.mrb[0].mxu0 %v228
    %v568 = vpop.f32.mrb[0].mxu0
    %v569 = vadd.f32 %v352, %v568
    %v570 = vpop.f32.mrb[0].mxu0
    %v571 = vpop.f32.mrb[0].mxu0
    %v572 = vadd.f32 %v355, %v571
    %v573 = vpop.f32.mrb[0].mxu0
    %574 = vmatprep.mubr.bf16.mxu0 0
    %575 = vmatmul.mubr.bf16.gmra.mrb[0].mxu0 %v229
    %v576 = vpop.f32.mrb[0].mxu0
    %v577 = vadd.f32 %v360, %v576
    %v578 = vpop.f32.mrb[0].mxu0
    %v579 = vpop.f32.mrb[0].mxu0
    %v580 = vadd.f32 %v363, %v579
    %v581 = vpop.f32.mrb[0].mxu0
    %582 = vdwg.mxu0
    %v583 = vadd.f32 %v569, %v472
    %v584 = vadd.f32 %v572, %v475
    %v585 = vadd.f32 %v577, %v480
    %v586 = vadd.f32 %v580, %v483
    %v587 = vld [vmem:[%s4] sm:$0x1]
    %v589 = vlaneseq
    %v590 = vshrl.u32 %v589, 7
    %v591 = vsub.s32 0, %v590
    %v592 = vrot.slane %v587, %v591
    %v594 = vadd.f32 %v583, %v592
    %v595 = vadd.f32 %v584, %v592
    %v596 = vadd.f32 %v585, %v592
    %v597 = vadd.f32 %v586, %v592
    %vm598 = vcmp.ge.f32.partialorder %v594, 0.0
    %vm599 = vcmp.ge.f32.partialorder %v595, 0.0
    %vm600 = vcmp.ge.f32.partialorder %v596, 0.0
    %vm601 = vcmp.ge.f32.partialorder %v597, 0.0
    %v602 = vmul.f32 %v594, 0.01
    %v603 = vmul.f32 %v595, 0.01
    %v604 = vmul.f32 %v596, 0.01
    %v605 = vmul.f32 %v597, 0.01
    %v606 = vsel %vm598, %v594, %v602
    %v607 = vsel %vm599, %v595, %v603
    %v608 = vsel %vm600, %v596, %v604
    %v609 = vsel %vm601, %v597, %v605
    %v610 = vld [vmem:[%s7] sm:$0x1]
    %v611 = vld [vmem:[%s8] sm:$0x1]
    %v612 = vadd.f32 %v606, %v607
    %v613 = vadd.f32 %v612, %v608
    %v614 = vadd.f32 %v613, %v609
    %v615 = vrot.slane %v614, 4
    %v616 = vadd.f32 %v614, %v615
    %v617 = vrot.slane %v616, 2
    %v618 = vadd.f32 %v616, %v617
    %v619 = vrot.slane %v618, 1
    %v620 = vadd.f32 %v618, %v619
    %v621 = vmul.f32 %v606, %v606
    %v622 = vmul.f32 %v607, %v607
    %v623 = vmul.f32 %v608, %v608
    %v624 = vmul.f32 %v609, %v609
    %v625 = vadd.f32 %v621, %v622
    %v626 = vadd.f32 %v625, %v623
    %v627 = vadd.f32 %v626, %v624
    %v628 = vrot.slane %v627, 4
    %v629 = vadd.f32 %v627, %v628
    %v630 = vrot.slane %v629, 2
    %v631 = vadd.f32 %v629, %v630
    %v632 = vrot.slane %v631, 1
    %v633 = vadd.f32 %v631, %v632
    %634 = vrot.lane.b32.xlu0 %v620, 8
    %v635 = vpop.permute.xlu0 %634
    %v636 = vadd.f32 %v620, %v635
    %637 = vrot.lane.b32.xlu0 %v633, 8
    %v638 = vpop.permute.xlu0 %637
    %v639 = vadd.f32 %v633, %v638
    %640 = vrot.lane.b32.xlu0 %v636, 16
    %v641 = vpop.permute.xlu0 %640
    %v642 = vadd.f32 %v636, %v641
    %643 = vrot.lane.b32.xlu0 %v639, 16
    %v644 = vpop.permute.xlu0 %643
    %v645 = vadd.f32 %v639, %v644
    %646 = vrot.lane.b32.xlu0 %v642, 32
    %v647 = vpop.permute.xlu0 %646
    %v648 = vadd.f32 %v642, %v647
    %649 = vrot.lane.b32.xlu0 %v645, 32
    %v650 = vpop.permute.xlu0 %649
    %v651 = vadd.f32 %v645, %v650
    %652 = vrot.lane.b32.xlu0 %v648, 64
    %v653 = vpop.permute.xlu0 %652
    %v654 = vadd.f32 %v648, %v653
    %655 = vrot.lane.b32.xlu0 %v651, 64
    %v656 = vpop.permute.xlu0 %655
    %v657 = vadd.f32 %v651, %v656
    %v658 = vmul.f32 %v654, 0.001953125
    %v659 = vmul.f32 %v657, 0.001953125
    %v660 = vmul.f32 %v658, %v658
    %v661 = vsub.f32 %v659, %v660
    %v662 = vmax.f32 %v661, 0.0
    %v663 = vadd.f32 %v662, 1e-05
    %v664 = vrsqrt.pop %v663
    %v665 = vmul.f32 %v610, %v664
    %v666 = vmul.f32 %v658, %v665
    %v667 = vsub.f32 %v611, %v666
    %v669 = vlaneseq
    %v670 = vshrl.u32 %v669, 7
    %v671 = vsub.s32 0, %v670
    %v672 = vrot.slane %v665, %v671
    %v674 = vmul.f32 %v606, %v672
    %v675 = vmul.f32 %v607, %v672
    %v676 = vmul.f32 %v608, %v672
    %v677 = vmul.f32 %v609, %v672
    %v679 = vlaneseq
    %v680 = vshrl.u32 %v679, 7
    %v681 = vsub.s32 0, %v680
    %v682 = vrot.slane %v667, %v681
    %v684 = vadd.f32 %v674, %v682
    %v685 = vadd.f32 %v675, %v682
    %v686 = vadd.f32 %v676, %v682
    %v687 = vadd.f32 %v677, %v682
    %688 = vst [vmem:[#allocation2 + $0x2] sm:$0xff] %v684
    %689 = vst [vmem:[#allocation2 + $0xa] sm:$0xff] %v685
    %690 = vst [vmem:[#allocation2 + $0x1a] sm:$0xff] %v686
    %691 = vst [vmem:[#allocation2 + $0x22] sm:$0xff] %v687
    %v692 = vld [vmem:[#allocation2] sm:$0xff]
    %v693 = vld [vmem:[#allocation2 + $0x8] sm:$0xff]
    %v694 = vld [vmem:[#allocation2 + $0x18] sm:$0xff]
    %v695 = vld [vmem:[#allocation2 + $0x20] sm:$0xff]
    %v696 = vpack.c.bf16 %v693, %v692
    %v697 = vpack.c.bf16 %v695, %v694
    %v698 = vld [vmem:[#allocation9] sm:$0xf]
    %v699 = vld [vmem:[#allocation9 + $0x4] sm:$0xf]
    %v700 = vld [vmem:[#allocation9 + $0x8] sm:$0xf]
    %v701 = vld [vmem:[#allocation9 + $0xc] sm:$0xf]
    %v702 = vld [vmem:[#allocation9 + $0x10] sm:$0xf]
    %v703 = vld [vmem:[#allocation9 + $0x14] sm:$0xf]
    %v704 = vld [vmem:[#allocation9 + $0x18] sm:$0xf]
    %v705 = vld [vmem:[#allocation9 + $0x1c] sm:$0xf]
    %v706 = vld [vmem:[#allocation9 + $0x20] sm:$0xf]
    %v707 = vld [vmem:[#allocation9 + $0x24] sm:$0xf]
    %v708 = vld [vmem:[#allocation9 + $0x28] sm:$0xf]
    %v709 = vld [vmem:[#allocation9 + $0x2c] sm:$0xf]
    %v710 = vld [vmem:[#allocation9 + $0x30] sm:$0xf]
    %v711 = vld [vmem:[#allocation9 + $0x34] sm:$0xf]
    %v712 = vld [vmem:[#allocation9 + $0x38] sm:$0xf]
    %v713 = vld [vmem:[#allocation9 + $0x3c] sm:$0xf]
    %v714 = vld [vmem:[#allocation2 + $0x2] sm:$0xff]
    %v715 = vld [vmem:[#allocation2 + $0xa] sm:$0xff]
    %v716 = vld [vmem:[#allocation2 + $0x1a] sm:$0xff]
    %v717 = vld [vmem:[#allocation2 + $0x22] sm:$0xff]
    %v718 = vpack.c.bf16 %v715, %v714
    %v719 = vpack.c.bf16 %v717, %v716
    %s720 = scalar_lea.vmem [#allocation9], 64
    %v721 = vld [vmem:[%s720] sm:$0xf]
    %v722 = vld [vmem:[%s720 + $0x4] sm:$0xf]
    %v723 = vld [vmem:[%s720 + $0x8] sm:$0xf]
    %v724 = vld [vmem:[%s720 + $0xc] sm:$0xf]
    %v725 = vld [vmem:[%s720 + $0x10] sm:$0xf]
    %v726 = vld [vmem:[%s720 + $0x14] sm:$0xf]
    %v727 = vld [vmem:[%s720 + $0x18] sm:$0xf]
    %v728 = vld [vmem:[%s720 + $0x1c] sm:$0xf]
    %v729 = vld [vmem:[%s720 + $0x20] sm:$0xf]
    %v730 = vld [vmem:[%s720 + $0x24] sm:$0xf]
    %v731 = vld [vmem:[%s720 + $0x28] sm:$0xf]
    %v732 = vld [vmem:[%s720 + $0x2c] sm:$0xf]
    %v733 = vld [vmem:[%s720 + $0x30] sm:$0xf]
    %v734 = vld [vmem:[%s720 + $0x34] sm:$0xf]
    %v735 = vld [vmem:[%s720 + $0x38] sm:$0xf]
    %v736 = vld [vmem:[%s720 + $0x3c] sm:$0xf]
    %v753 = vunpack.c.l.b16 %v721
    %v754 = vunpack.c.l.b16 %v722
    %v755 = vunpack.c.l.b16 %v723
    %v756 = vunpack.c.l.b16 %v724
    %v757 = vunpack.c.l.b16 %v725
    %v758 = vunpack.c.l.b16 %v726
    %v759 = vunpack.c.l.b16 %v727
    %v760 = vunpack.c.l.b16 %v728
    %v761 = vunpack.c.l.b16 %v729
    %v762 = vunpack.c.l.b16 %v730
    %v763 = vunpack.c.l.b16 %v731
    %v764 = vunpack.c.l.b16 %v732
    %v765 = vunpack.c.l.b16 %v733
    %v766 = vunpack.c.l.b16 %v734
    %v767 = vunpack.c.l.b16 %v735
    %v768 = vunpack.c.l.b16 %v736
    %v769 = vpack.c.b16 %v754, %v753
    %v770 = vpack.c.b16 %v756, %v755
    %v771 = vpack.c.b16 %v758, %v757
    %v772 = vpack.c.b16 %v760, %v759
    %v773 = vpack.c.b16 %v762, %v761
    %v774 = vpack.c.b16 %v764, %v763
    %v775 = vpack.c.b16 %v766, %v765
    %v776 = vpack.c.b16 %v768, %v767
    %785 = vmatprep.subr.bf16.mxu0 0
    %786 = vmatpush1.bf16.msra.mxu0 %v769
    %787 = vmatprep.subr.bf16.mxu0 0
    %788 = vmatpush1.bf16.msra.mxu0 %v770
    %789 = vmatprep.subr.bf16.mxu0 0
    %790 = vmatpush1.bf16.msra.mxu0 %v771
    %791 = vmatprep.subr.bf16.mxu0 0
    %792 = vmatpush1.bf16.msra.mxu0 %v772
    %793 = vmatprep.subr.bf16.mxu0 0
    %794 = vmatpush1.bf16.msra.mxu0 %v773
    %795 = vmatprep.subr.bf16.mxu0 0
    %796 = vmatpush1.bf16.msra.mxu0 %v774
    %797 = vmatprep.subr.bf16.mxu0 0
    %798 = vmatpush1.bf16.msra.mxu0 %v775
    %799 = vmatprep.subr.bf16.mxu0 0
    %800 = vmatpush1.bf16.msra.mxu0 %v776
    %801 = vmatprep.subr.bf16.mxu0 0
    %802 = vmatpush1.bf16.msra.mxu0 0
    %803 = vmatprep.subr.bf16.mxu0 0
    %804 = vmatpush1.bf16.msra.mxu0 0
    %805 = vmatprep.subr.bf16.mxu0 0
    %806 = vmatpush1.bf16.msra.mxu0 0
    %807 = vmatprep.subr.bf16.mxu0 0
    %808 = vmatpush1.bf16.msra.mxu0 0
    %809 = vmatprep.subr.bf16.mxu0 0
    %810 = vmatpush1.bf16.msra.mxu0 0
    %811 = vmatprep.subr.bf16.mxu0 0
    %812 = vmatpush1.bf16.msra.mxu0 0
    %813 = vmatprep.subr.bf16.mxu0 0
    %814 = vmatpush1.bf16.msra.mxu0 0
    %815 = vmatprep.subr.bf16.mxu0 0
    %816 = vmatpush1.bf16.msra.mxu0 0
    %817 = vmatprep.mubr.bf16.mxu0 0
    %818 = vmatmul.mubr.bf16.gmra.mrb[0].mxu0 %v718
    %v819 = vpop.f32.mrb[0].mxu0
    %v820 = vadd.f32 0.0, %v819
    %v821 = vpop.f32.mrb[0].mxu0
    %v822 = vpop.f32.mrb[0].mxu0
    %v823 = vadd.f32 0.0, %v822
    %v824 = vpop.f32.mrb[0].mxu0
    %825 = vmatprep.mubr.bf16.mxu0 0
    %826 = vmatmul.mubr.bf16.gmra.mrb[0].mxu0 %v719
    %v827 = vpop.f32.mrb[0].mxu0
    %v828 = vadd.f32 0.0, %v827
    %v829 = vpop.f32.mrb[0].mxu0
    %v830 = vpop.f32.mrb[0].mxu0
    %v831 = vadd.f32 0.0, %v830
    %v832 = vpop.f32.mrb[0].mxu0
    %833 = vdwg.mxu0
    %v834 = vld [vmem:[#allocation2 + $0x4] sm:$0xff]
    %v835 = vld [vmem:[#allocation2 + $0xc] sm:$0xff]
    %v836 = vld [vmem:[#allocation2 + $0x1c] sm:$0xff]
    %v837 = vld [vmem:[#allocation2 + $0x24] sm:$0xff]
    %v838 = vpack.c.bf16 %v835, %v834
    %v839 = vpack.c.bf16 %v837, %v836
    %s840 = scalar_lea.vmem [#allocation9], 128
    %v841 = vld [vmem:[%s840] sm:$0xf]
    %v842 = vld [vmem:[%s840 + $0x4] sm:$0xf]
    %v843 = vld [vmem:[%s840 + $0x8] sm:$0xf]
    %v844 = vld [vmem:[%s840 + $0xc] sm:$0xf]
    %v845 = vld [vmem:[%s840 + $0x10] sm:$0xf]
    %v846 = vld [vmem:[%s840 + $0x14] sm:$0xf]
    %v847 = vld [vmem:[%s840 + $0x18] sm:$0xf]
    %v848 = vld [vmem:[%s840 + $0x1c] sm:$0xf]
    %v849 = vld [vmem:[%s840 + $0x20] sm:$0xf]
    %v850 = vld [vmem:[%s840 + $0x24] sm:$0xf]
    %v851 = vld [vmem:[%s840 + $0x28] sm:$0xf]
    %v852 = vld [vmem:[%s840 + $0x2c] sm:$0xf]
    %v853 = vld [vmem:[%s840 + $0x30] sm:$0xf]
    %v854 = vld [vmem:[%s840 + $0x34] sm:$0xf]
    %v855 = vld [vmem:[%s840 + $0x38] sm:$0xf]
    %v856 = vld [vmem:[%s840 + $0x3c] sm:$0xf]
    %v873 = vunpack.c.l.b16 %v841
    %v874 = vunpack.c.l.b16 %v842
    %v875 = vunpack.c.l.b16 %v843
    %v876 = vunpack.c.l.b16 %v844
    %v877 = vunpack.c.l.b16 %v845
    %v878 = vunpack.c.l.b16 %v846
    %v879 = vunpack.c.l.b16 %v847
    %v880 = vunpack.c.l.b16 %v848
    %v881 = vunpack.c.l.b16 %v849
    %v882 = vunpack.c.l.b16 %v850
    %v883 = vunpack.c.l.b16 %v851
    %v884 = vunpack.c.l.b16 %v852
    %v885 = vunpack.c.l.b16 %v853
    %v886 = vunpack.c.l.b16 %v854
    %v887 = vunpack.c.l.b16 %v855
    %v888 = vunpack.c.l.b16 %v856
    %v889 = vpack.c.b16 %v874, %v873
    %v890 = vpack.c.b16 %v876, %v875
    %v891 = vpack.c.b16 %v878, %v877
    %v892 = vpack.c.b16 %v880, %v879
    %v893 = vpack.c.b16 %v882, %v881
    %v894 = vpack.c.b16 %v884, %v883
    %v895 = vpack.c.b16 %v886, %v885
    %v896 = vpack.c.b16 %v888, %v887
    %905 = vmatprep.subr.bf16.mxu0 0
    %906 = vmatpush1.bf16.msra.mxu0 %v889
    %907 = vmatprep.subr.bf16.mxu0 0
    %908 = vmatpush1.bf16.msra.mxu0 %v890
    %909 = vmatprep.subr.bf16.mxu0 0
    %910 = vmatpush1.bf16.msra.mxu0 %v891
    %911 = vmatprep.subr.bf16.mxu0 0
    %912 = vmatpush1.bf16.msra.mxu0 %v892
    %913 = vmatprep.subr.bf16.mxu0 0
    %914 = vmatpush1.bf16.msra.mxu0 %v893
    %915 = vmatprep.subr.bf16.mxu0 0
    %916 = vmatpush1.bf16.msra.mxu0 %v894
    %917 = vmatprep.subr.bf16.mxu0 0
    %918 = vmatpush1.bf16.msra.mxu0 %v895
    %919 = vmatprep.subr.bf16.mxu0 0
    %920 = vmatpush1.bf16.msra.mxu0 %v896
    %921 = vmatprep.subr.bf16.mxu0 0
    %922 = vmatpush1.bf16.msra.mxu0 0
    %923 = vmatprep.subr.bf16.mxu0 0
    %924 = vmatpush1.bf16.msra.mxu0 0
    %925 = vmatprep.subr.bf16.mxu0 0
    %926 = vmatpush1.bf16.msra.mxu0 0
    %927 = vmatprep.subr.bf16.mxu0 0
    %928 = vmatpush1.bf16.msra.mxu0 0
    %929 = vmatprep.subr.bf16.mxu0 0
    %930 = vmatpush1.bf16.msra.mxu0 0
    %931 = vmatprep.subr.bf16.mxu0 0
    %932 = vmatpush1.bf16.msra.mxu0 0
    %933 = vmatprep.subr.bf16.mxu0 0
    %934 = vmatpush1.bf16.msra.mxu0 0
    %935 = vmatprep.subr.bf16.mxu0 0
    %936 = vmatpush1.bf16.msra.mxu0 0
    %937 = vmatprep.mubr.bf16.mxu0 0
    %938 = vmatmul.mubr.bf16.gmra.mrb[0].mxu0 %v838
    %v939 = vpop.f32.mrb[0].mxu0
    %v940 = vadd.f32 0.0, %v939
    %v941 = vpop.f32.mrb[0].mxu0
    %v942 = vpop.f32.mrb[0].mxu0
    %v943 = vadd.f32 0.0, %v942
    %v944 = vpop.f32.mrb[0].mxu0
    %945 = vmatprep.mubr.bf16.mxu0 0
    %946 = vmatmul.mubr.bf16.gmra.mrb[0].mxu0 %v839
    %v947 = vpop.f32.mrb[0].mxu0
    %v948 = vadd.f32 0.0, %v947
    %v949 = vpop.f32.mrb[0].mxu0
    %v950 = vpop.f32.mrb[0].mxu0
    %v951 = vadd.f32 0.0, %v950
    %v952 = vpop.f32.mrb[0].mxu0
    %953 = vdwg.mxu0
    %v970 = vunpack.c.l.b16 %v698
    %v971 = vunpack.c.l.b16 %v699
    %v972 = vunpack.c.l.b16 %v700
    %v973 = vunpack.c.l.b16 %v701
    %v974 = vunpack.c.l.b16 %v702
    %v975 = vunpack.c.l.b16 %v703
    %v976 = vunpack.c.l.b16 %v704
    %v977 = vunpack.c.l.b16 %v705
    %v978 = vunpack.c.l.b16 %v706
    %v979 = vunpack.c.l.b16 %v707
    %v980 = vunpack.c.l.b16 %v708
    %v981 = vunpack.c.l.b16 %v709
    %v982 = vunpack.c.l.b16 %v710
    %v983 = vunpack.c.l.b16 %v711
    %v984 = vunpack.c.l.b16 %v712
    %v985 = vunpack.c.l.b16 %v713
    %v986 = vpack.c.b16 %v971, %v970
    %v987 = vpack.c.b16 %v973, %v972
    %v988 = vpack.c.b16 %v975, %v974
    %v989 = vpack.c.b16 %v977, %v976
    %v990 = vpack.c.b16 %v979, %v978
    %v991 = vpack.c.b16 %v981, %v980
    %v992 = vpack.c.b16 %v983, %v982
    %v993 = vpack.c.b16 %v985, %v984
    %1002 = vmatprep.subr.bf16.mxu0 0
    %1003 = vmatpush1.bf16.msra.mxu0 %v986
    %1004 = vmatprep.subr.bf16.mxu0 0
    %1005 = vmatpush1.bf16.msra.mxu0 %v987
    %1006 = vmatprep.subr.bf16.mxu0 0
    %1007 = vmatpush1.bf16.msra.mxu0 %v988
    %1008 = vmatprep.subr.bf16.mxu0 0
    %1009 = vmatpush1.bf16.msra.mxu0 %v989
    %1010 = vmatprep.subr.bf16.mxu0 0
    %1011 = vmatpush1.bf16.msra.mxu0 %v990
    %1012 = vmatprep.subr.bf16.mxu0 0
    %1013 = vmatpush1.bf16.msra.mxu0 %v991
    %1014 = vmatprep.subr.bf16.mxu0 0
    %1015 = vmatpush1.bf16.msra.mxu0 %v992
    %1016 = vmatprep.subr.bf16.mxu0 0
    %1017 = vmatpush1.bf16.msra.mxu0 %v993
    %1018 = vmatprep.subr.bf16.mxu0 0
    %1019 = vmatpush1.bf16.msra.mxu0 0
    %1020 = vmatprep.subr.bf16.mxu0 0
    %1021 = vmatpush1.bf16.msra.mxu0 0
    %1022 = vmatprep.subr.bf16.mxu0 0
    %1023 = vmatpush1.bf16.msra.mxu0 0
    %1024 = vmatprep.subr.bf16.mxu0 0
    %1025 = vmatpush1.bf16.msra.mxu0 0
    %1026 = vmatprep.subr.bf16.mxu0 0
    %1027 = vmatpush1.bf16.msra.mxu0 0
    %1028 = vmatprep.subr.bf16.mxu0 0
    %1029 = vmatpush1.bf16.msra.mxu0 0
    %1030 = vmatprep.subr.bf16.mxu0 0
    %1031 = vmatpush1.bf16.msra.mxu0 0
    %1032 = vmatprep.subr.bf16.mxu0 0
    %1033 = vmatpush1.bf16.msra.mxu0 0
    %1034 = vmatprep.mubr.bf16.mxu0 0
    %1035 = vmatmul.mubr.bf16.gmra.mrb[0].mxu0 %v696
    %v1036 = vpop.f32.mrb[0].mxu0
    %v1037 = vadd.f32 %v820, %v1036
    %v1038 = vpop.f32.mrb[0].mxu0
    %v1039 = vpop.f32.mrb[0].mxu0
    %v1040 = vadd.f32 %v823, %v1039
    %v1041 = vpop.f32.mrb[0].mxu0
    %1042 = vmatprep.mubr.bf16.mxu0 0
    %1043 = vmatmul.mubr.bf16.gmra.mrb[0].mxu0 %v697
    %v1044 = vpop.f32.mrb[0].mxu0
    %v1045 = vadd.f32 %v828, %v1044
    %v1046 = vpop.f32.mrb[0].mxu0
    %v1047 = vpop.f32.mrb[0].mxu0
    %v1048 = vadd.f32 %v831, %v1047
    %v1049 = vpop.f32.mrb[0].mxu0
    %1050 = vdwg.mxu0
    %v1051 = vadd.f32 %v1037, %v940
    %v1052 = vadd.f32 %v1040, %v943
    %v1053 = vadd.f32 %v1045, %v948
    %v1054 = vadd.f32 %v1048, %v951
    %v1055 = vld [vmem:[%s6] sm:$0x1]
    %v1057 = vlaneseq
    %v1058 = vshrl.u32 %v1057, 7
    %v1059 = vsub.s32 0, %v1058
    %v1060 = vrot.slane %v1055, %v1059
    %v1062 = vadd.f32 %v1051, %v1060
    %v1063 = vadd.f32 %v1052, %v1060
    %v1064 = vadd.f32 %v1053, %v1060
    %v1065 = vadd.f32 %v1054, %v1060
    %vm1066 = vcmp.ge.f32.partialorder %v1062, 0.0
    %vm1067 = vcmp.ge.f32.partialorder %v1063, 0.0
    %vm1068 = vcmp.ge.f32.partialorder %v1064, 0.0
    %vm1069 = vcmp.ge.f32.partialorder %v1065, 0.0
    %v1070 = vmul.f32 %v1062, 0.01
    %v1071 = vmul.f32 %v1063, 0.01
    %v1072 = vmul.f32 %v1064, 0.01
    %v1073 = vmul.f32 %v1065, 0.01
    %v1074 = vsel %vm1066, %v1062, %v1070
    %v1075 = vsel %vm1067, %v1063, %v1071
    %v1076 = vsel %vm1068, %v1064, %v1072
    %v1077 = vsel %vm1069, %v1065, %v1073
    %v1078 = vld [vmem:[%s9] sm:$0x1]
    %v1079 = vld [vmem:[%s10] sm:$0x1]
    %v1080 = vadd.f32 %v1074, %v1075
    %v1081 = vadd.f32 %v1080, %v1076
    %v1082 = vadd.f32 %v1081, %v1077
    %v1083 = vrot.slane %v1082, 4
    %v1084 = vadd.f32 %v1082, %v1083
    %v1085 = vrot.slane %v1084, 2
    %v1086 = vadd.f32 %v1084, %v1085
    %v1087 = vrot.slane %v1086, 1
    %v1088 = vadd.f32 %v1086, %v1087
    %v1089 = vmul.f32 %v1074, %v1074
    %v1090 = vmul.f32 %v1075, %v1075
    %v1091 = vmul.f32 %v1076, %v1076
    %v1092 = vmul.f32 %v1077, %v1077
    %v1093 = vadd.f32 %v1089, %v1090
    %v1094 = vadd.f32 %v1093, %v1091
    %v1095 = vadd.f32 %v1094, %v1092
    %v1096 = vrot.slane %v1095, 4
    %v1097 = vadd.f32 %v1095, %v1096
    %v1098 = vrot.slane %v1097, 2
    %v1099 = vadd.f32 %v1097, %v1098
    %v1100 = vrot.slane %v1099, 1
    %v1101 = vadd.f32 %v1099, %v1100
    %1102 = vrot.lane.b32.xlu0 %v1088, 8
    %v1103 = vpop.permute.xlu0 %1102
    %v1104 = vadd.f32 %v1088, %v1103
    %1105 = vrot.lane.b32.xlu0 %v1101, 8
    %v1106 = vpop.permute.xlu0 %1105
    %v1107 = vadd.f32 %v1101, %v1106
    %1108 = vrot.lane.b32.xlu0 %v1104, 16
    %v1109 = vpop.permute.xlu0 %1108
    %v1110 = vadd.f32 %v1104, %v1109
    %1111 = vrot.lane.b32.xlu0 %v1107, 16
    %v1112 = vpop.permute.xlu0 %1111
    %v1113 = vadd.f32 %v1107, %v1112
    %1114 = vrot.lane.b32.xlu0 %v1110, 32
    %v1115 = vpop.permute.xlu0 %1114
    %v1116 = vadd.f32 %v1110, %v1115
    %1117 = vrot.lane.b32.xlu0 %v1113, 32
    %v1118 = vpop.permute.xlu0 %1117
    %v1119 = vadd.f32 %v1113, %v1118
    %1120 = vrot.lane.b32.xlu0 %v1116, 64
    %v1121 = vpop.permute.xlu0 %1120
    %v1122 = vadd.f32 %v1116, %v1121
    %1123 = vrot.lane.b32.xlu0 %v1119, 64
    %v1124 = vpop.permute.xlu0 %1123
    %v1125 = vadd.f32 %v1119, %v1124
    %v1126 = vmul.f32 %v1122, 0.001953125
    %v1127 = vmul.f32 %v1125, 0.001953125
    %v1128 = vmul.f32 %v1126, %v1126
    %v1129 = vsub.f32 %v1127, %v1128
    %v1130 = vmax.f32 %v1129, 0.0
    %v1131 = vadd.f32 %v1130, 1e-05
    %v1132 = vrsqrt.pop %v1131
    %v1133 = vmul.f32 %v1078, %v1132
    %v1134 = vmul.f32 %v1126, %v1133
    %v1135 = vsub.f32 %v1079, %v1134
    %v1137 = vlaneseq
    %v1138 = vshrl.u32 %v1137, 7
    %v1139 = vsub.s32 0, %v1138
    %v1140 = vrot.slane %v1133, %v1139
    %v1142 = vmul.f32 %v1074, %v1140
    %v1143 = vmul.f32 %v1075, %v1140
    %v1144 = vmul.f32 %v1076, %v1140
    %v1145 = vmul.f32 %v1077, %v1140
    %v1147 = vlaneseq
    %v1148 = vshrl.u32 %v1147, 7
    %v1149 = vsub.s32 0, %v1148
    %v1150 = vrot.slane %v1135, %v1149
    %v1152 = vadd.f32 %v1142, %v1150
    %v1153 = vadd.f32 %v1143, %v1150
    %v1154 = vadd.f32 %v1144, %v1150
    %v1155 = vadd.f32 %v1145, %v1150
    %v1156 = vadd.f32 %v212, %v1152
    %v1157 = vadd.f32 %v213, %v1153
    %v1158 = vadd.f32 %v214, %v1154
    %v1159 = vadd.f32 %v215, %v1155
    %1160 = vst [vmem:[#allocation11] sm:$0xff] %v1156
    %1161 = vst [vmem:[#allocation11 + $0x8] sm:$0xff] %v1157
    %1162 = vst [vmem:[#allocation11 + $0x10] sm:$0xff] %v1158
    %1163 = vst [vmem:[#allocation11 + $0x18] sm:$0xff] %v1159
    // Predicated region
    $region62: #{tpu_custom_call.1} parent=1 // pred_check
      _
    $region63: #{tpu_custom_call.1} parent=1 // pred_check_branch
      %1165 = sbr.rel (0) target = $region65
    $region64: #{tpu_custom_call.1} parent=1 // pred_region
      %s1167 = ssub.s32 512, 512
      %1168 = vsyncadd [#allocation5], %s1167
      %s1169 = sshll.u32 [#allocation11], 4
      %s1170 = int_to_ptr.vmem [resolvable:$true] %s1169
      %1175 = dma.vmem_to_hbm [thread:$0]  %s1170, 512, %s11, [#allocation5], 128, 128, 8
    $region65: #{tpu_custom_call.1} parent=1 // pred_fallthru
      _
    // Predicated region
    $region66: #{tpu_custom_call.1} parent=1 // pred_check
      _
    $region67: #{tpu_custom_call.1} parent=1 // pred_check_branch
      %1177 = sbr.rel (0) target = $region69
    $region68: #{tpu_custom_call.1} parent=1 // pred_region
      %1178 = dma.done [#allocation5], 512
    $region69: #{tpu_custom_call.1} parent=1 // pred_fallthru
      _
    %1179 = vsyncpa [#allocation4], 1
    %1180 = vsyncpa [#allocation7], 1
    %1181 = vsyncpa [#allocation10], 1
    %1182 = vsyncpa [#allocation5], 1

</llo_original>
